<compile_context>
chip_gen: v6e
topology: v6e:2x2x1
jax: 0.10.0
libtpu: 0.0.40
codegen_flags: <defaults>
</compile_context>

<pallas_src>
import numpy as np

import jax
import jax.numpy as jnp
from jax import lax
from jax.experimental import pallas as pl
from jax.experimental.pallas import tpu as pltpu


# ------------------------------------------------------------------
# conv -> (row-selection, banded-weight) operands, built once at setup
# ------------------------------------------------------------------

def _conv_band_operands(w_hwio, H, W, stride, pad, nb):
    """Express conv2d(act, w, stride, pad) on 2-D activations ACT[h, w*Cin+ci]
    (nb samples stacked on the row axis) as   OUT = sum_i S[i] @ ACT @ B[i].

    S[i] : (nb*Ho, nb*H)      0/1 block-diagonal row selection (stride + H pad)
    B[i] : (W*Cin, Wo*Cout)   banded weights (column taps + stride + W pad)
    """
    kh, kw, cin, cout = w_hwio.shape
    Ho = (H + 2 * pad - kh) // stride + 1
    Wo = (W + 2 * pad - kw) // stride + 1

    s1 = np.zeros((kh, Ho, H), np.float32)
    for i in range(kh):
        for ho in range(Ho):
            h = stride * ho + i - pad
            if 0 <= h < H:
                s1[i, ho, h] = 1.0
    S = np.zeros((kh, nb * Ho, nb * H), np.float32)      # block-diag over batch tile
    for b in range(nb):
        S[:, b * Ho:(b + 1) * Ho, b * H:(b + 1) * H] = s1

    P = np.zeros((kw, W, Wo), np.float32)
    for j in range(kw):
        for wo in range(Wo):
            wc = stride * wo + j - pad
            if 0 <= wc < W:
                P[j, wc, wo] = 1.0

    B = jnp.einsum("jwv,ijcd->iwcvd", jnp.asarray(P), w_hwio.astype(jnp.float32))
    B = B.reshape(kh, W * cin, Wo * cout)
    return jnp.asarray(S, jnp.bfloat16), B.astype(jnp.bfloat16), Ho, Wo


# ------------------------------------------------------------------
# per-BasicBlock operand preparation
# ------------------------------------------------------------------

def _prepare_block(p, H, W, cin, cout, stride, nb):
    has_sc = (cin != cout)
    if (not has_sc) and stride != 1:
        # torch's BasicBlock would also fail here (identity add, mismatched shapes)
        raise ValueError("identity shortcut with stride > 1 is invalid")

    kh, kw = int(p["w1"].shape[0]), int(p["w1"].shape[1])
    kh2, kw2 = int(p["w2"].shape[0]), int(p["w2"].shape[1])
    # WRN BasicBlock assumption (3x3, pad=1): both the 1x1-shortcut middle-tap
    # reuse and the roll-based stride-1 conv rely on it.
    assert (kh, kw) == (3, 3) and (kh2, kw2) == (3, 3), "expected 3x3 convs (pad=1)"

    # Fold BN2's scale into conv1's output channels at setup (the shortcut bypasses
    # BN2, so Bsc is NOT folded); only the BN2 bias add remains in-kernel.
    w1_folded = (p["w1"].astype(jnp.float32)
                 * p["bn2_scale"].astype(jnp.float32)[None, None, None, :])
    S1, B1, Ho, Wo = _conv_band_operands(w1_folded, H, W, stride, 1, nb)
    S2, B2, Ho2, Wo2 = _conv_band_operands(p["w2"], Ho, Wo, 1, 1, nb)
    assert (Ho2, Wo2) == (Ho, Wo)

    conv1_roll = (stride == 1)     # stride-1 3x3: per-tap matmul + sublane roll
    conv2_roll = True              # conv2 is always stride 1

    bn1s = jnp.tile(p["bn1_scale"].astype(jnp.float32), W).reshape(1, W * cin)
    bn1b = jnp.tile(p["bn1_bias"].astype(jnp.float32), W).reshape(1, W * cin)
    bn2b = jnp.tile(p["bn2_bias"].astype(jnp.float32), Wo).reshape(1, Wo * cout)

    ops, names = [bn1s, bn1b], ["bn1s", "bn1b"]
    if not conv1_roll:
        ops.append(S1); names.append("S1")
    ops.append(B1); names.append("B1")
    if has_sc:
        _, Bsc, Hs_, Ws_ = _conv_band_operands(p["ws"], H, W, stride, 0, nb)
        assert (Hs_, Ws_) == (Ho, Wo)
        ops.append(Bsc[0]); names.append("Bsc")
    ops.append(bn2b); names.append("bn2b")
    if not conv2_roll:
        ops.append(S2); names.append("S2")
    ops.append(B2); names.append("B2")

    meta = dict(
        has_sc=has_sc,
        conv1=dict(roll=conv1_roll, kh=kh, hs=Ho, r=nb * Ho),
        conv2=dict(roll=conv2_roll, kh=kh2, hs=Ho, r=nb * Ho),
    )
    return ops, names, meta, Ho, Wo


# ------------------------------------------------------------------
# fused whole-NetworkBlock kernel
# ------------------------------------------------------------------

def _make_network_kernel(metas, layouts):
    f32 = jnp.float32

    def conv_sel(a, s_ref, b_ref, kh):
        """conv = sum_i (S_i @ a) @ B_i   (strided row selection on the MXU)."""
        acc, mid = None, None
        for i in range(kh):                                   # static tap loop
            rows = jnp.dot(s_ref[i], a, preferred_element_type=f32).astype(jnp.bfloat16)
            t = jnp.dot(rows, b_ref[i], preferred_element_type=f32)
            acc = t if acc is None else acc + t
            if i == kh // 2:
                mid = rows                                    # reused by 1x1 shortcut
        return acc, mid

    def conv_roll(a, b_ref, kh, hs, r):
        """Stride-1 conv: per-tap matmul, then sublane roll (XLU) + boundary mask
        (VPU) instead of a second selection matmul — half the MXU pushes."""
        rid = lax.broadcasted_iota(jnp.int32, (r, 1), 0) % hs  # per-sample row id
        acc = jnp.dot(a, b_ref[kh // 2], preferred_element_type=f32)  # center tap
        for i in range(kh):
            if i == kh // 2:
                continue
            o = i - kh // 2                                   # row offset of this tap
            t = jnp.dot(a, b_ref[i], preferred_element_type=f32)
            shifted = pltpu.roll(t, shift=(-o) % r, axis=0)   # out[ho] = t[ho + o]
            valid = (rid < hs - o) if o > 0 else (rid >= -o)  # zero-pad boundary rows
            acc = acc + jnp.where(valid, shifted, 0.0)
        return acc

    def kernel(*refs):
        x_ref, o_ref = refs[0], refs[-1]
        ops = refs[1:-1]

        act = x_ref[...]                                      # (nb*H, W*Cin) f32
        pos = 0
        for meta, names in zip(metas, layouts):               # static over blocks
            d = {}
            for nm in names:
                d[nm] = ops[pos]
                pos += 1

            # BN1 + ReLU (f32), bf16 operand for the MXU.
            a1 = jnp.maximum(act * d["bn1s"][...] + d["bn1b"][...], 0.0
                             ).astype(jnp.bfloat16)

            c1 = meta["conv1"]
            sc = None
            if c1["roll"]:
                acc1 = conv_roll(a1, d["B1"], c1["kh"], c1["hs"], c1["r"])
                if meta["has_sc"]:                            # stride-1 1x1 = plain matmul
                    sc = jnp.dot(a1, d["Bsc"][...], preferred_element_type=f32)
            else:
                acc1, mid = conv_sel(a1, d["S1"], d["B1"], c1["kh"])
                if meta["has_sc"]:                            # 1x1 shares conv1 middle tap
                    sc = jnp.dot(mid, d["Bsc"][...], preferred_element_type=f32)

            # BN2 scale is folded into B1 at setup; only the bias add remains.
            a2 = jnp.maximum(acc1 + d["bn2b"][...], 0.0).astype(jnp.bfloat16)

            c2 = meta["conv2"]
            if c2["roll"]:
                acc2 = conv_roll(a2, d["B2"], c2["kh"], c2["hs"], c2["r"])
            else:
                acc2, _ = conv_sel(a2, d["S2"], d["B2"], c2["kh"])

            act = acc2 + (sc if meta["has_sc"] else act)      # residual add

        o_ref[...] = act.astype(o_ref.dtype)

    return kernel


# ------------------------------------------------------------------
# pallas_call construction + NCHW wrapper
# ------------------------------------------------------------------

def _choose_batch_tile(N, h_in, h_out, target_rows=256):
    """Samples stacked per grid step: fill the MXU sublane axis (~256 rows) while
    keeping >= 2 'parallel' grid steps when possible (v7x: 2 TensorCores)."""
    divs = [d for d in range(1, N + 1) if N % d == 0]
    ok = [d for d in divs
          if d * h_in <= max(h_in, target_rows)
          and (d == N or ((d * h_in) % 8 == 0 and (d * h_out) % 8 == 0))]
    if not ok:
        return N
    pref = [d for d in ok if N // d >= 2]
    return max(pref) if pref else max(ok)


def _build_forward(params, strides, in_planes, H, W, N, nb):
    operands, layouts, metas = [], [], []
    cin, h, w = in_planes, H, W
    for p, s in zip(params, strides):
        cout = int(p["w1"].shape[-1])
        ops_b, names_b, meta_b, h, w = _prepare_block(p, h, w, cin, cout, s, nb)
        operands += ops_b
        layouts.append(names_b)
        metas.append(meta_b)
        cin = cout
    Ho, Wo, Cout = h, w, cin

    kernel = _make_network_kernel(metas, layouts)

    # Whole NetworkBlock = ONE pallas_call; grid is batch tiles only.
    in_specs = [pl.BlockSpec((nb * H, W * in_planes), lambda g: (g, 0))]
    for a in operands:   # grid-invariant operands: constant block index -> resident
        in_specs.append(pl.BlockSpec(a.shape, (lambda g, _nd=a.ndim: (0,) * _nd)))
    out_spec = pl.BlockSpec((nb * Ho, Wo * Cout), lambda g: (g, 0))

    call = pl.pallas_call(
        kernel,
        out_shape=jax.ShapeDtypeStruct((N * Ho, Wo * Cout), jnp.float32),
        grid=(N // nb,),
        in_specs=in_specs,
        out_specs=out_spec,
        compiler_params=pltpu.CompilerParams(dimension_semantics=("parallel",)),
    )

    def forward(x_nchw):
        x = jnp.transpose(x_nchw, (0, 2, 3, 1)).astype(jnp.float32)  # NCHW -> NHWC
        x = x.reshape(N * H, W * in_planes)       # samples stacked on sublane axis
        y = call(x, *operands)
        y = y.reshape(N, Ho, Wo, Cout)
        return jnp.transpose(y, (0, 3, 1, 2))     # NHWC -> NCHW

    return forward, (Ho, Wo, Cout)


def make_network_block(params, strides, in_planes, H, W):
    # static layer geometry (needed to pick the batch tile)
    h, w = H, W
    for p, s in zip(params, strides):
        kh, kw = int(p["w1"].shape[0]), int(p["w1"].shape[1])
        h = (h + 2 - kh) // s + 1
        w = (w + 2 - kw) // s + 1
    h_out = h

    cache = {}

    def forward(x_nchw):
        N = int(x_nchw.shape[0])
        if N not in cache:
            nb = _choose_batch_tile(N, H, h_out)
            fwd, _ = _build_forward(params, strides, in_planes, H, W, N, nb)
            cache[N] = jax.jit(fwd)
        return cache[N](x_nchw)

    return forward


# ------------------------------------------------------------------
# deterministic parameters (folded BN statistics) + pure-JAX reference
# ------------------------------------------------------------------

def init_network_block_params(key, nb_layers, in_planes, out_planes, stride, eps=1e-5):
    params, strides = [], []
    for i in range(int(nb_layers)):
        cin = in_planes if i == 0 else out_planes
        s = stride if i == 0 else 1
        key, *ks = jax.random.split(key, 13)

        def bn_fold(kg, kb, km, kv, c):
            gamma = 1.0 + 0.1 * jax.random.normal(kg, (c,), jnp.float32)
            beta = 0.1 * jax.random.normal(kb, (c,), jnp.float32)
            mean = 0.1 * jax.random.normal(km, (c,), jnp.float32)
            var = 1.0 + 0.1 * jnp.abs(jax.random.normal(kv, (c,), jnp.float32))
            scale = gamma / jnp.sqrt(var + eps)
            bias = beta - mean * scale
            return scale, bias

        bn1_scale, bn1_bias = bn_fold(ks[0], ks[1], ks[2], ks[3], cin)
        bn2_scale, bn2_bias = bn_fold(ks[4], ks[5], ks[6], ks[7], out_planes)
        w1 = jax.random.normal(ks[8], (3, 3, cin, out_planes), jnp.float32) \
            * (2.0 / (9 * cin)) ** 0.5
        w2 = jax.random.normal(ks[9], (3, 3, out_planes, out_planes), jnp.float32) \
            * (2.0 / (9 * out_planes)) ** 0.5
        p = dict(bn1_scale=bn1_scale, bn1_bias=bn1_bias, w1=w1,
                 bn2_scale=bn2_scale, bn2_bias=bn2_bias, w2=w2)
        if cin != out_planes:
            p["ws"] = jax.random.normal(ks[10], (1, 1, cin, out_planes),
                                        jnp.float32) * (2.0 / cin) ** 0.5
        params.append(p)
        strides.append(s)
    return params, strides


def reference_forward(x_nchw, params, strides):
    """Pure-JAX reference. Uses the same inference-mode BN folding and bf16
    operand quantization (a1/a2, BN2-scale-folded w1, w2, ws) as the kernel so
    the comparison isolates the conv / row-selection / roll math."""
    dn = ("NHWC", "HWIO", "NHWC")
    x = jnp.transpose(x_nchw, (0, 2, 3, 1)).astype(jnp.float32)
    for p, s in zip(params, strides):
        cin = x.shape[-1]
        cout = p["w1"].shape[-1]
        a1 = jnp.maximum(x * p["bn1_scale"] + p["bn1_bias"], 0.0).astype(jnp.bfloat16)
        w1f = (p["w1"] * p["bn2_scale"][None, None, None, :]).astype(jnp.bfloat16)
        out = lax.conv_general_dilated(a1, w1f, (s, s), ((1, 1), (1, 1)),
                                       dimension_numbers=dn,
                                       preferred_element_type=jnp.float32)
        a2 = jnp.maximum(out + p["bn2_bias"], 0.0).astype(jnp.bfloat16)
        out = lax.conv_general_dilated(a2, p["w2"].astype(jnp.bfloat16), (1, 1),
                                       ((1, 1), (1, 1)), dimension_numbers=dn,
                                       preferred_element_type=jnp.float32)
        if cin == cout:
            sc = x
        else:
            sc = lax.conv_general_dilated(a1, p["ws"].astype(jnp.bfloat16), (s, s),
                                          ((0, 0), (0, 0)), dimension_numbers=dn,
                                          preferred_element_type=jnp.float32)
        x = sc + out
    return jnp.transpose(x, (0, 3, 1, 2))


if __name__ == "__main__":
    key = jax.random.PRNGKey(0)
    kp, kx = jax.random.split(key)

    # NetworkBlock(nb_layers=2, in_planes=4, out_planes=8, block=BasicBlock, stride=2)
    nb_layers, in_planes, out_planes, stride = 2, 4, 8, 2
    H = W = 16
    params, strides = init_network_block_params(kp, nb_layers, in_planes,
                                                out_planes, stride)

    x = jax.random.normal(kx, (2, in_planes, H, W), dtype=jnp.float32)   # NCHW

    forward = make_network_block(params, strides, in_planes, H, W)
    y = forward(x)
    jax.block_until_ready(y)

    assert y.shape == (2, out_planes, H // stride, W // stride), y.shape
    assert y.dtype == jnp.float32

    y_ref = reference_forward(x, params, strides)
    scale = float(jnp.max(jnp.abs(y_ref)))
    rel = float(jnp.max(jnp.abs(y - y_ref))) / max(scale, 1e-6)
    assert rel < 5e-3, f"relative err vs reference = {rel}"

    print("KERNEL_OK")
</pallas_src>

<mosaic_0001>
module attributes {stable_mosaic.version = 11 : i64} {
  func.func @kernel(%arg0: i32, %arg1: memref<16x64xf32, #tpu.memory_space<vmem>>, %arg2: memref<1x64xf32, #tpu.memory_space<vmem>>, %arg3: memref<1x64xf32, #tpu.memory_space<vmem>>, %arg4: memref<3x8x16xbf16, #tpu.memory_space<vmem>>, %arg5: memref<3x64x64xbf16, #tpu.memory_space<vmem>>, %arg6: memref<64x64xbf16, #tpu.memory_space<vmem>>, %arg7: memref<1x64xf32, #tpu.memory_space<vmem>>, %arg8: memref<3x64x64xbf16, #tpu.memory_space<vmem>>, %arg9: memref<1x64xf32, #tpu.memory_space<vmem>>, %arg10: memref<1x64xf32, #tpu.memory_space<vmem>>, %arg11: memref<3x64x64xbf16, #tpu.memory_space<vmem>>, %arg12: memref<1x64xf32, #tpu.memory_space<vmem>>, %arg13: memref<3x64x64xbf16, #tpu.memory_space<vmem>>, %arg14: memref<8x64xf32, #tpu.memory_space<vmem>>) attributes {dimension_semantics = [#tpu.dimension_semantics<parallel>], iteration_bounds = array<i64: 2>, scalar_prefetch = 0 : i64, scratch_operands = 0 : i64, tpu.core_type = #tpu.core_type<tc>, window_params = [{transform_indices = @transform_0, window_bounds = array<i64: 16, 64>}, {pipeline_mode = #tpu.pipeline_mode<synchronous>, transform_indices = @transform_1, window_bounds = array<i64: 1, 64>}, {pipeline_mode = #tpu.pipeline_mode<synchronous>, transform_indices = @transform_2, window_bounds = array<i64: 1, 64>}, {pipeline_mode = #tpu.pipeline_mode<synchronous>, transform_indices = @transform_3, window_bounds = array<i64: 3, 8, 16>}, {pipeline_mode = #tpu.pipeline_mode<synchronous>, transform_indices = @transform_4, window_bounds = array<i64: 3, 64, 64>}, {pipeline_mode = #tpu.pipeline_mode<synchronous>, transform_indices = @transform_5, window_bounds = array<i64: 64, 64>}, {pipeline_mode = #tpu.pipeline_mode<synchronous>, transform_indices = @transform_6, window_bounds = array<i64: 1, 64>}, {pipeline_mode = #tpu.pipeline_mode<synchronous>, transform_indices = @transform_7, window_bounds = array<i64: 3, 64, 64>}, {pipeline_mode = #tpu.pipeline_mode<synchronous>, transform_indices = @transform_8, window_bounds = array<i64: 1, 64>}, {pipeline_mode = #tpu.pipeline_mode<synchronous>, transform_indices = @transform_9, window_bounds = array<i64: 1, 64>}, {pipeline_mode = #tpu.pipeline_mode<synchronous>, transform_indices = @transform_10, window_bounds = array<i64: 3, 64, 64>}, {pipeline_mode = #tpu.pipeline_mode<synchronous>, transform_indices = @transform_11, window_bounds = array<i64: 1, 64>}, {pipeline_mode = #tpu.pipeline_mode<synchronous>, transform_indices = @transform_12, window_bounds = array<i64: 3, 64, 64>}, {transform_indices = @transform_13, window_bounds = array<i64: 8, 64>}]} {
    %c0 = arith.constant 0 : index
    %c0_0 = arith.constant 0 : index
    %0 = vector.load %arg1[%c0, %c0_0] : memref<16x64xf32, #tpu.memory_space<vmem>>, vector<16x64xf32>
    %c0_1 = arith.constant 0 : index
    %c0_2 = arith.constant 0 : index
    %1 = vector.load %arg2[%c0_1, %c0_2] : memref<1x64xf32, #tpu.memory_space<vmem>>, vector<1x64xf32>
    %2 = vector.broadcast %1 : vector<1x64xf32> to vector<16x64xf32>
    %3 = arith.mulf %0, %2 : vector<16x64xf32>
    %c0_3 = arith.constant 0 : index
    %c0_4 = arith.constant 0 : index
    %4 = vector.load %arg3[%c0_3, %c0_4] : memref<1x64xf32, #tpu.memory_space<vmem>>, vector<1x64xf32>
    %5 = vector.broadcast %4 : vector<1x64xf32> to vector<16x64xf32>
    %6 = arith.addf %3, %5 : vector<16x64xf32>
    %cst = arith.constant 0.000000e+00 : f32
    %7 = vector.broadcast %cst : f32 to vector<16x64xf32>
    %8 = arith.maximumf %6, %7 : vector<16x64xf32>
    %9 = arith.truncf %8 : vector<16x64xf32> to vector<16x64xbf16>
    %c0_5 = arith.constant 0 : index
    %c0_6 = arith.constant 0 : index
    %c0_7 = arith.constant 0 : index
    %10 = vector.load %arg4[%c0_5, %c0_6, %c0_7] : memref<3x8x16xbf16, #tpu.memory_space<vmem>>, vector<1x8x16xbf16>
    %11 = vector.shape_cast %10 : vector<1x8x16xbf16> to vector<8x16xbf16>
    %cst_8 = arith.constant dense<0.000000e+00> : vector<8x64xf32>
    %12 = tpu.matmul %11, %9, %cst_8 {dimension_numbers = #tpu.dot_dimension_numbers<[1], [0], [0], [1], [0, 0, 1, 1], [], []>} : vector<8x16xbf16>, vector<16x64xbf16>, vector<8x64xf32> -> vector<8x64xf32>
    %13 = arith.truncf %12 : vector<8x64xf32> to vector<8x64xbf16>
    %c0_9 = arith.constant 0 : index
    %c0_10 = arith.constant 0 : index
    %c0_11 = arith.constant 0 : index
    %14 = vector.load %arg5[%c0_9, %c0_10, %c0_11] : memref<3x64x64xbf16, #tpu.memory_space<vmem>>, vector<1x64x64xbf16>
    %15 = vector.shape_cast %14 : vector<1x64x64xbf16> to vector<64x64xbf16>
    %cst_12 = arith.constant dense<0.000000e+00> : vector<8x64xf32>
    %16 = tpu.matmul %13, %15, %cst_12 {dimension_numbers = #tpu.dot_dimension_numbers<[1], [0], [0], [1], [0, 0, 1, 1], [], []>} : vector<8x64xbf16>, vector<64x64xbf16>, vector<8x64xf32> -> vector<8x64xf32>
    %c1 = arith.constant 1 : index
    %c0_13 = arith.constant 0 : index
    %c0_14 = arith.constant 0 : index
    %17 = vector.load %arg4[%c1, %c0_13, %c0_14] : memref<3x8x16xbf16, #tpu.memory_space<vmem>>, vector<1x8x16xbf16>
    %18 = vector.shape_cast %17 : vector<1x8x16xbf16> to vector<8x16xbf16>
    %cst_15 = arith.constant dense<0.000000e+00> : vector<8x64xf32>
    %19 = tpu.matmul %18, %9, %cst_15 {dimension_numbers = #tpu.dot_dimension_numbers<[1], [0], [0], [1], [0, 0, 1, 1], [], []>} : vector<8x16xbf16>, vector<16x64xbf16>, vector<8x64xf32> -> vector<8x64xf32>
    %20 = arith.truncf %19 : vector<8x64xf32> to vector<8x64xbf16>
    %c1_16 = arith.constant 1 : index
    %c0_17 = arith.constant 0 : index
    %c0_18 = arith.constant 0 : index
    %21 = vector.load %arg5[%c1_16, %c0_17, %c0_18] : memref<3x64x64xbf16, #tpu.memory_space<vmem>>, vector<1x64x64xbf16>
    %22 = vector.shape_cast %21 : vector<1x64x64xbf16> to vector<64x64xbf16>
    %cst_19 = arith.constant dense<0.000000e+00> : vector<8x64xf32>
    %23 = tpu.matmul %20, %22, %cst_19 {dimension_numbers = #tpu.dot_dimension_numbers<[1], [0], [0], [1], [0, 0, 1, 1], [], []>} : vector<8x64xbf16>, vector<64x64xbf16>, vector<8x64xf32> -> vector<8x64xf32>
    %24 = arith.addf %16, %23 : vector<8x64xf32>
    %c2 = arith.constant 2 : index
    %c0_20 = arith.constant 0 : index
    %c0_21 = arith.constant 0 : index
    %25 = vector.load %arg4[%c2, %c0_20, %c0_21] : memref<3x8x16xbf16, #tpu.memory_space<vmem>>, vector<1x8x16xbf16>
    %26 = vector.shape_cast %25 : vector<1x8x16xbf16> to vector<8x16xbf16>
    %cst_22 = arith.constant dense<0.000000e+00> : vector<8x64xf32>
    %27 = tpu.matmul %26, %9, %cst_22 {dimension_numbers = #tpu.dot_dimension_numbers<[1], [0], [0], [1], [0, 0, 1, 1], [], []>} : vector<8x16xbf16>, vector<16x64xbf16>, vector<8x64xf32> -> vector<8x64xf32>
    %28 = arith.truncf %27 : vector<8x64xf32> to vector<8x64xbf16>
    %c2_23 = arith.constant 2 : index
    %c0_24 = arith.constant 0 : index
    %c0_25 = arith.constant 0 : index
    %29 = vector.load %arg5[%c2_23, %c0_24, %c0_25] : memref<3x64x64xbf16, #tpu.memory_space<vmem>>, vector<1x64x64xbf16>
    %30 = vector.shape_cast %29 : vector<1x64x64xbf16> to vector<64x64xbf16>
    %cst_26 = arith.constant dense<0.000000e+00> : vector<8x64xf32>
    %31 = tpu.matmul %28, %30, %cst_26 {dimension_numbers = #tpu.dot_dimension_numbers<[1], [0], [0], [1], [0, 0, 1, 1], [], []>} : vector<8x64xbf16>, vector<64x64xbf16>, vector<8x64xf32> -> vector<8x64xf32>
    %32 = arith.addf %24, %31 : vector<8x64xf32>
    %c0_27 = arith.constant 0 : index
    %c0_28 = arith.constant 0 : index
    %33 = vector.load %arg6[%c0_27, %c0_28] : memref<64x64xbf16, #tpu.memory_space<vmem>>, vector<64x64xbf16>
    %cst_29 = arith.constant dense<0.000000e+00> : vector<8x64xf32>
    %34 = tpu.matmul %20, %33, %cst_29 {dimension_numbers = #tpu.dot_dimension_numbers<[1], [0], [0], [1], [0, 0, 1, 1], [], []>} : vector<8x64xbf16>, vector<64x64xbf16>, vector<8x64xf32> -> vector<8x64xf32>
    %c0_30 = arith.constant 0 : index
    %c0_31 = arith.constant 0 : index
    %35 = vector.load %arg7[%c0_30, %c0_31] : memref<1x64xf32, #tpu.memory_space<vmem>>, vector<1x64xf32>
    %36 = vector.broadcast %35 : vector<1x64xf32> to vector<8x64xf32>
    %37 = arith.addf %32, %36 : vector<8x64xf32>
    %cst_32 = arith.constant 0.000000e+00 : f32
    %38 = vector.broadcast %cst_32 : f32 to vector<8x64xf32>
    %39 = arith.maximumf %37, %38 : vector<8x64xf32>
    %40 = arith.truncf %39 : vector<8x64xf32> to vector<8x64xbf16>
    %41 = tpu.iota {dimensions = array<i32: 0>} : vector<8x1xi32>
    %c8_i32 = arith.constant 8 : i32
    %c0_i32 = arith.constant 0 : i32
    %42 = arith.cmpi eq, %c8_i32, %c0_i32 : i32
    %c1_i32 = arith.constant 1 : i32
    %43 = arith.select %42, %c1_i32, %c8_i32 : i32
    %44 = vector.broadcast %43 : i32 to vector<8x1xi32>
    %45 = arith.remsi %41, %44 : vector<8x1xi32>
    %c0_i32_33 = arith.constant 0 : i32
    %46 = vector.broadcast %c0_i32_33 : i32 to vector<8x1xi32>
    %47 = arith.cmpi ne, %45, %46 : vector<8x1xi32>
    %c0_i32_34 = arith.constant 0 : i32
    %48 = vector.broadcast %c0_i32_34 : i32 to vector<8x1xi32>
    %49 = arith.cmpi slt, %45, %48 : vector<8x1xi32>
    %c0_i32_35 = arith.constant 0 : i32
    %50 = arith.cmpi slt, %43, %c0_i32_35 : i32
    %51 = vector.broadcast %50 : i1 to vector<8x1xi1>
    %52 = vector.broadcast %51 : vector<8x1xi1> to vector<8x1xi1>
    %53 = arith.xori %49, %52 : vector<8x1xi1>
    %54 = arith.andi %53, %47 : vector<8x1xi1>
    %55 = vector.broadcast %43 : i32 to vector<8x1xi32>
    %56 = arith.addi %45, %55 : vector<8x1xi32>
    %57 = arith.select %54, %56, %45 : vector<8x1xi1>, vector<8x1xi32>
    %c1_36 = arith.constant 1 : index
    %c0_37 = arith.constant 0 : index
    %c0_38 = arith.constant 0 : index
    %58 = vector.load %arg8[%c1_36, %c0_37, %c0_38] : memref<3x64x64xbf16, #tpu.memory_space<vmem>>, vector<1x64x64xbf16>
    %59 = vector.shape_cast %58 : vector<1x64x64xbf16> to vector<64x64xbf16>
    %cst_39 = arith.constant dense<0.000000e+00> : vector<8x64xf32>
    %60 = tpu.matmul %40, %59, %cst_39 {dimension_numbers = #tpu.dot_dimension_numbers<[1], [0], [0], [1], [0, 0, 1, 1], [], []>} : vector<8x64xbf16>, vector<64x64xbf16>, vector<8x64xf32> -> vector<8x64xf32>
    %c0_40 = arith.constant 0 : index
    %c0_41 = arith.constant 0 : index
    %c0_42 = arith.constant 0 : index
    %61 = vector.load %arg8[%c0_40, %c0_41, %c0_42] : memref<3x64x64xbf16, #tpu.memory_space<vmem>>, vector<1x64x64xbf16>
    %62 = vector.shape_cast %61 : vector<1x64x64xbf16> to vector<64x64xbf16>
    %cst_43 = arith.constant dense<0.000000e+00> : vector<8x64xf32>
    %63 = tpu.matmul %40, %62, %cst_43 {dimension_numbers = #tpu.dot_dimension_numbers<[1], [0], [0], [1], [0, 0, 1, 1], [], []>} : vector<8x64xbf16>, vector<64x64xbf16>, vector<8x64xf32> -> vector<8x64xf32>
    %c1_i32_44 = arith.constant 1 : i32
    %64 = tpu.dynamic_rotate %63 by %c1_i32_44 dim 0 : vector<8x64xf32>, i32 -> vector<8x64xf32>
    %c1_i32_45 = arith.constant 1 : i32
    %65 = vector.broadcast %c1_i32_45 : i32 to vector<8x1xi32>
    %66 = arith.cmpi sge, %57, %65 : vector<8x1xi32>
    %cst_46 = arith.constant 0.000000e+00 : f32
    %67 = vector.shape_cast %66 : vector<8x1xi1> to vector<8x1xi1>
    %68 = vector.broadcast %67 : vector<8x1xi1> to vector<8x64xi1>
    %69 = vector.broadcast %cst_46 : f32 to vector<8x64xf32>
    %70 = arith.select %68, %64, %69 : vector<8x64xi1>, vector<8x64xf32>
    %71 = arith.addf %60, %70 : vector<8x64xf32>
    %c2_47 = arith.constant 2 : index
    %c0_48 = arith.constant 0 : index
    %c0_49 = arith.constant 0 : index
    %72 = vector.load %arg8[%c2_47, %c0_48, %c0_49] : memref<3x64x64xbf16, #tpu.memory_space<vmem>>, vector<1x64x64xbf16>
    %73 = vector.shape_cast %72 : vector<1x64x64xbf16> to vector<64x64xbf16>
    %cst_50 = arith.constant dense<0.000000e+00> : vector<8x64xf32>
    %74 = tpu.matmul %40, %73, %cst_50 {dimension_numbers = #tpu.dot_dimension_numbers<[1], [0], [0], [1], [0, 0, 1, 1], [], []>} : vector<8x64xbf16>, vector<64x64xbf16>, vector<8x64xf32> -> vector<8x64xf32>
    %c7_i32 = arith.constant 7 : i32
    %75 = tpu.dynamic_rotate %74 by %c7_i32 dim 0 : vector<8x64xf32>, i32 -> vector<8x64xf32>
    %c7_i32_51 = arith.constant 7 : i32
    %76 = vector.broadcast %c7_i32_51 : i32 to vector<8x1xi32>
    %77 = arith.cmpi slt, %57, %76 : vector<8x1xi32>
    %cst_52 = arith.constant 0.000000e+00 : f32
    %78 = vector.shape_cast %77 : vector<8x1xi1> to vector<8x1xi1>
    %79 = vector.broadcast %78 : vector<8x1xi1> to vector<8x64xi1>
    %80 = vector.broadcast %cst_52 : f32 to vector<8x64xf32>
    %81 = arith.select %79, %75, %80 : vector<8x64xi1>, vector<8x64xf32>
    %82 = arith.addf %71, %81 : vector<8x64xf32>
    %83 = arith.addf %82, %34 : vector<8x64xf32>
    %c0_53 = arith.constant 0 : index
    %c0_54 = arith.constant 0 : index
    %84 = vector.load %arg9[%c0_53, %c0_54] : memref<1x64xf32, #tpu.memory_space<vmem>>, vector<1x64xf32>
    %85 = vector.broadcast %84 : vector<1x64xf32> to vector<8x64xf32>
    %86 = arith.mulf %83, %85 : vector<8x64xf32>
    %c0_55 = arith.constant 0 : index
    %c0_56 = arith.constant 0 : index
    %87 = vector.load %arg10[%c0_55, %c0_56] : memref<1x64xf32, #tpu.memory_space<vmem>>, vector<1x64xf32>
    %88 = vector.broadcast %87 : vector<1x64xf32> to vector<8x64xf32>
    %89 = arith.addf %86, %88 : vector<8x64xf32>
    %cst_57 = arith.constant 0.000000e+00 : f32
    %90 = vector.broadcast %cst_57 : f32 to vector<8x64xf32>
    %91 = arith.maximumf %89, %90 : vector<8x64xf32>
    %92 = arith.truncf %91 : vector<8x64xf32> to vector<8x64xbf16>
    %93 = tpu.iota {dimensions = array<i32: 0>} : vector<8x1xi32>
    %c8_i32_58 = arith.constant 8 : i32
    %c0_i32_59 = arith.constant 0 : i32
    %94 = arith.cmpi eq, %c8_i32_58, %c0_i32_59 : i32
    %c1_i32_60 = arith.constant 1 : i32
    %95 = arith.select %94, %c1_i32_60, %c8_i32_58 : i32
    %96 = vector.broadcast %95 : i32 to vector<8x1xi32>
    %97 = arith.remsi %93, %96 : vector<8x1xi32>
    %c0_i32_61 = arith.constant 0 : i32
    %98 = vector.broadcast %c0_i32_61 : i32 to vector<8x1xi32>
    %99 = arith.cmpi ne, %97, %98 : vector<8x1xi32>
    %c0_i32_62 = arith.constant 0 : i32
    %100 = vector.broadcast %c0_i32_62 : i32 to vector<8x1xi32>
    %101 = arith.cmpi slt, %97, %100 : vector<8x1xi32>
    %c0_i32_63 = arith.constant 0 : i32
    %102 = arith.cmpi slt, %95, %c0_i32_63 : i32
    %103 = vector.broadcast %102 : i1 to vector<8x1xi1>
    %104 = vector.broadcast %103 : vector<8x1xi1> to vector<8x1xi1>
    %105 = arith.xori %101, %104 : vector<8x1xi1>
    %106 = arith.andi %105, %99 : vector<8x1xi1>
    %107 = vector.broadcast %95 : i32 to vector<8x1xi32>
    %108 = arith.addi %97, %107 : vector<8x1xi32>
    %109 = arith.select %106, %108, %97 : vector<8x1xi1>, vector<8x1xi32>
    %c1_64 = arith.constant 1 : index
    %c0_65 = arith.constant 0 : index
    %c0_66 = arith.constant 0 : index
    %110 = vector.load %arg11[%c1_64, %c0_65, %c0_66] : memref<3x64x64xbf16, #tpu.memory_space<vmem>>, vector<1x64x64xbf16>
    %111 = vector.shape_cast %110 : vector<1x64x64xbf16> to vector<64x64xbf16>
    %cst_67 = arith.constant dense<0.000000e+00> : vector<8x64xf32>
    %112 = tpu.matmul %92, %111, %cst_67 {dimension_numbers = #tpu.dot_dimension_numbers<[1], [0], [0], [1], [0, 0, 1, 1], [], []>} : vector<8x64xbf16>, vector<64x64xbf16>, vector<8x64xf32> -> vector<8x64xf32>
    %c0_68 = arith.constant 0 : index
    %c0_69 = arith.constant 0 : index
    %c0_70 = arith.constant 0 : index
    %113 = vector.load %arg11[%c0_68, %c0_69, %c0_70] : memref<3x64x64xbf16, #tpu.memory_space<vmem>>, vector<1x64x64xbf16>
    %114 = vector.shape_cast %113 : vector<1x64x64xbf16> to vector<64x64xbf16>
    %cst_71 = arith.constant dense<0.000000e+00> : vector<8x64xf32>
    %115 = tpu.matmul %92, %114, %cst_71 {dimension_numbers = #tpu.dot_dimension_numbers<[1], [0], [0], [1], [0, 0, 1, 1], [], []>} : vector<8x64xbf16>, vector<64x64xbf16>, vector<8x64xf32> -> vector<8x64xf32>
    %c1_i32_72 = arith.constant 1 : i32
    %116 = tpu.dynamic_rotate %115 by %c1_i32_72 dim 0 : vector<8x64xf32>, i32 -> vector<8x64xf32>
    %c1_i32_73 = arith.constant 1 : i32
    %117 = vector.broadcast %c1_i32_73 : i32 to vector<8x1xi32>
    %118 = arith.cmpi sge, %109, %117 : vector<8x1xi32>
    %cst_74 = arith.constant 0.000000e+00 : f32
    %119 = vector.shape_cast %118 : vector<8x1xi1> to vector<8x1xi1>
    %120 = vector.broadcast %119 : vector<8x1xi1> to vector<8x64xi1>
    %121 = vector.broadcast %cst_74 : f32 to vector<8x64xf32>
    %122 = arith.select %120, %116, %121 : vector<8x64xi1>, vector<8x64xf32>
    %123 = arith.addf %112, %122 : vector<8x64xf32>
    %c2_75 = arith.constant 2 : index
    %c0_76 = arith.constant 0 : index
    %c0_77 = arith.constant 0 : index
    %124 = vector.load %arg11[%c2_75, %c0_76, %c0_77] : memref<3x64x64xbf16, #tpu.memory_space<vmem>>, vector<1x64x64xbf16>
    %125 = vector.shape_cast %124 : vector<1x64x64xbf16> to vector<64x64xbf16>
    %cst_78 = arith.constant dense<0.000000e+00> : vector<8x64xf32>
    %126 = tpu.matmul %92, %125, %cst_78 {dimension_numbers = #tpu.dot_dimension_numbers<[1], [0], [0], [1], [0, 0, 1, 1], [], []>} : vector<8x64xbf16>, vector<64x64xbf16>, vector<8x64xf32> -> vector<8x64xf32>
    %c7_i32_79 = arith.constant 7 : i32
    %127 = tpu.dynamic_rotate %126 by %c7_i32_79 dim 0 : vector<8x64xf32>, i32 -> vector<8x64xf32>
    %c7_i32_80 = arith.constant 7 : i32
    %128 = vector.broadcast %c7_i32_80 : i32 to vector<8x1xi32>
    %129 = arith.cmpi slt, %109, %128 : vector<8x1xi32>
    %cst_81 = arith.constant 0.000000e+00 : f32
    %130 = vector.shape_cast %129 : vector<8x1xi1> to vector<8x1xi1>
    %131 = vector.broadcast %130 : vector<8x1xi1> to vector<8x64xi1>
    %132 = vector.broadcast %cst_81 : f32 to vector<8x64xf32>
    %133 = arith.select %131, %127, %132 : vector<8x64xi1>, vector<8x64xf32>
    %134 = arith.addf %123, %133 : vector<8x64xf32>
    %c0_82 = arith.constant 0 : index
    %c0_83 = arith.constant 0 : index
    %135 = vector.load %arg12[%c0_82, %c0_83] : memref<1x64xf32, #tpu.memory_space<vmem>>, vector<1x64xf32>
    %136 = vector.broadcast %135 : vector<1x64xf32> to vector<8x64xf32>
    %137 = arith.addf %134, %136 : vector<8x64xf32>
    %cst_84 = arith.constant 0.000000e+00 : f32
    %138 = vector.broadcast %cst_84 : f32 to vector<8x64xf32>
    %139 = arith.maximumf %137, %138 : vector<8x64xf32>
    %140 = arith.truncf %139 : vector<8x64xf32> to vector<8x64xbf16>
    %141 = tpu.iota {dimensions = array<i32: 0>} : vector<8x1xi32>
    %c8_i32_85 = arith.constant 8 : i32
    %c0_i32_86 = arith.constant 0 : i32
    %142 = arith.cmpi eq, %c8_i32_85, %c0_i32_86 : i32
    %c1_i32_87 = arith.constant 1 : i32
    %143 = arith.select %142, %c1_i32_87, %c8_i32_85 : i32
    %144 = vector.broadcast %143 : i32 to vector<8x1xi32>
    %145 = arith.remsi %141, %144 : vector<8x1xi32>
    %c0_i32_88 = arith.constant 0 : i32
    %146 = vector.broadcast %c0_i32_88 : i32 to vector<8x1xi32>
    %147 = arith.cmpi ne, %145, %146 : vector<8x1xi32>
    %c0_i32_89 = arith.constant 0 : i32
    %148 = vector.broadcast %c0_i32_89 : i32 to vector<8x1xi32>
    %149 = arith.cmpi slt, %145, %148 : vector<8x1xi32>
    %c0_i32_90 = arith.constant 0 : i32
    %150 = arith.cmpi slt, %143, %c0_i32_90 : i32
    %151 = vector.broadcast %150 : i1 to vector<8x1xi1>
    %152 = vector.broadcast %151 : vector<8x1xi1> to vector<8x1xi1>
    %153 = arith.xori %149, %152 : vector<8x1xi1>
    %154 = arith.andi %153, %147 : vector<8x1xi1>
    %155 = vector.broadcast %143 : i32 to vector<8x1xi32>
    %156 = arith.addi %145, %155 : vector<8x1xi32>
    %157 = arith.select %154, %156, %145 : vector<8x1xi1>, vector<8x1xi32>
    %c1_91 = arith.constant 1 : index
    %c0_92 = arith.constant 0 : index
    %c0_93 = arith.constant 0 : index
    %158 = vector.load %arg13[%c1_91, %c0_92, %c0_93] : memref<3x64x64xbf16, #tpu.memory_space<vmem>>, vector<1x64x64xbf16>
    %159 = vector.shape_cast %158 : vector<1x64x64xbf16> to vector<64x64xbf16>
    %cst_94 = arith.constant dense<0.000000e+00> : vector<8x64xf32>
    %160 = tpu.matmul %140, %159, %cst_94 {dimension_numbers = #tpu.dot_dimension_numbers<[1], [0], [0], [1], [0, 0, 1, 1], [], []>} : vector<8x64xbf16>, vector<64x64xbf16>, vector<8x64xf32> -> vector<8x64xf32>
    %c0_95 = arith.constant 0 : index
    %c0_96 = arith.constant 0 : index
    %c0_97 = arith.constant 0 : index
    %161 = vector.load %arg13[%c0_95, %c0_96, %c0_97] : memref<3x64x64xbf16, #tpu.memory_space<vmem>>, vector<1x64x64xbf16>
    %162 = vector.shape_cast %161 : vector<1x64x64xbf16> to vector<64x64xbf16>
    %cst_98 = arith.constant dense<0.000000e+00> : vector<8x64xf32>
    %163 = tpu.matmul %140, %162, %cst_98 {dimension_numbers = #tpu.dot_dimension_numbers<[1], [0], [0], [1], [0, 0, 1, 1], [], []>} : vector<8x64xbf16>, vector<64x64xbf16>, vector<8x64xf32> -> vector<8x64xf32>
    %c1_i32_99 = arith.constant 1 : i32
    %164 = tpu.dynamic_rotate %163 by %c1_i32_99 dim 0 : vector<8x64xf32>, i32 -> vector<8x64xf32>
    %c1_i32_100 = arith.constant 1 : i32
    %165 = vector.broadcast %c1_i32_100 : i32 to vector<8x1xi32>
    %166 = arith.cmpi sge, %157, %165 : vector<8x1xi32>
    %cst_101 = arith.constant 0.000000e+00 : f32
    %167 = vector.shape_cast %166 : vector<8x1xi1> to vector<8x1xi1>
    %168 = vector.broadcast %167 : vector<8x1xi1> to vector<8x64xi1>
    %169 = vector.broadcast %cst_101 : f32 to vector<8x64xf32>
    %170 = arith.select %168, %164, %169 : vector<8x64xi1>, vector<8x64xf32>
    %171 = arith.addf %160, %170 : vector<8x64xf32>
    %c2_102 = arith.constant 2 : index
    %c0_103 = arith.constant 0 : index
    %c0_104 = arith.constant 0 : index
    %172 = vector.load %arg13[%c2_102, %c0_103, %c0_104] : memref<3x64x64xbf16, #tpu.memory_space<vmem>>, vector<1x64x64xbf16>
    %173 = vector.shape_cast %172 : vector<1x64x64xbf16> to vector<64x64xbf16>
    %cst_105 = arith.constant dense<0.000000e+00> : vector<8x64xf32>
    %174 = tpu.matmul %140, %173, %cst_105 {dimension_numbers = #tpu.dot_dimension_numbers<[1], [0], [0], [1], [0, 0, 1, 1], [], []>} : vector<8x64xbf16>, vector<64x64xbf16>, vector<8x64xf32> -> vector<8x64xf32>
    %c7_i32_106 = arith.constant 7 : i32
    %175 = tpu.dynamic_rotate %174 by %c7_i32_106 dim 0 : vector<8x64xf32>, i32 -> vector<8x64xf32>
    %c7_i32_107 = arith.constant 7 : i32
    %176 = vector.broadcast %c7_i32_107 : i32 to vector<8x1xi32>
    %177 = arith.cmpi slt, %157, %176 : vector<8x1xi32>
    %cst_108 = arith.constant 0.000000e+00 : f32
    %178 = vector.shape_cast %177 : vector<8x1xi1> to vector<8x1xi1>
    %179 = vector.broadcast %178 : vector<8x1xi1> to vector<8x64xi1>
    %180 = vector.broadcast %cst_108 : f32 to vector<8x64xf32>
    %181 = arith.select %179, %175, %180 : vector<8x64xi1>, vector<8x64xf32>
    %182 = arith.addf %171, %181 : vector<8x64xf32>
    %183 = arith.addf %182, %83 : vector<8x64xf32>
    %c0_109 = arith.constant 0 : index
    %c0_110 = arith.constant 0 : index
    %184 = vector.load %arg14[%c0_109, %c0_110] : memref<8x64xf32, #tpu.memory_space<vmem>>, vector<8x64xf32>
    tpu.vector_store %arg14[%c0_109, %c0_110], %183 {strides = array<i32>} : memref<8x64xf32, #tpu.memory_space<vmem>>, vector<8x64xf32>,
    return
  }
  func.func @transform_0(%arg0: i32) -> (i32, i32) {
    %c0_i32 = arith.constant 0 : i32
    %c0_i32_0 = arith.constant 0 : i32
    return %arg0, %c0_i32 : i32, i32
  }
  func.func @transform_1(%arg0: i32) -> (i32, i32) {
    %c0_i32 = arith.constant 0 : i32
    %c0_i32_0 = arith.constant 0 : i32
    %c0_i32_1 = arith.constant 0 : i32
    return %c0_i32, %c0_i32_0 : i32, i32
  }
  func.func @transform_2(%arg0: i32) -> (i32, i32) {
    %c0_i32 = arith.constant 0 : i32
    %c0_i32_0 = arith.constant 0 : i32
    %c0_i32_1 = arith.constant 0 : i32
    return %c0_i32, %c0_i32_0 : i32, i32
  }
  func.func @transform_3(%arg0: i32) -> (i32, i32, i32) {
    %c0_i32 = arith.constant 0 : i32
    %c0_i32_0 = arith.constant 0 : i32
    %c0_i32_1 = arith.constant 0 : i32
    %c0_i32_2 = arith.constant 0 : i32
    return %c0_i32, %c0_i32_0, %c0_i32_1 : i32, i32, i32
  }
  func.func @transform_4(%arg0: i32) -> (i32, i32, i32) {
    %c0_i32 = arith.constant 0 : i32
    %c0_i32_0 = arith.constant 0 : i32
    %c0_i32_1 = arith.constant 0 : i32
    %c0_i32_2 = arith.constant 0 : i32
    return %c0_i32, %c0_i32_0, %c0_i32_1 : i32, i32, i32
  }
  func.func @transform_5(%arg0: i32) -> (i32, i32) {
    %c0_i32 = arith.constant 0 : i32
    %c0_i32_0 = arith.constant 0 : i32
    %c0_i32_1 = arith.constant 0 : i32
    return %c0_i32, %c0_i32_0 : i32, i32
  }
  func.func @transform_6(%arg0: i32) -> (i32, i32) {
    %c0_i32 = arith.constant 0 : i32
    %c0_i32_0 = arith.constant 0 : i32
    %c0_i32_1 = arith.constant 0 : i32
    return %c0_i32, %c0_i32_0 : i32, i32
  }
  func.func @transform_7(%arg0: i32) -> (i32, i32, i32) {
    %c0_i32 = arith.constant 0 : i32
    %c0_i32_0 = arith.constant 0 : i32
    %c0_i32_1 = arith.constant 0 : i32
    %c0_i32_2 = arith.constant 0 : i32
    return %c0_i32, %c0_i32_0, %c0_i32_1 : i32, i32, i32
  }
  func.func @transform_8(%arg0: i32) -> (i32, i32) {
    %c0_i32 = arith.constant 0 : i32
    %c0_i32_0 = arith.constant 0 : i32
    %c0_i32_1 = arith.constant 0 : i32
    return %c0_i32, %c0_i32_0 : i32, i32
  }
  func.func @transform_9(%arg0: i32) -> (i32, i32) {
    %c0_i32 = arith.constant 0 : i32
    %c0_i32_0 = arith.constant 0 : i32
    %c0_i32_1 = arith.constant 0 : i32
    return %c0_i32, %c0_i32_0 : i32, i32
  }
  func.func @transform_10(%arg0: i32) -> (i32, i32, i32) {
    %c0_i32 = arith.constant 0 : i32
    %c0_i32_0 = arith.constant 0 : i32
    %c0_i32_1 = arith.constant 0 : i32
    %c0_i32_2 = arith.constant 0 : i32
    return %c0_i32, %c0_i32_0, %c0_i32_1 : i32, i32, i32
  }
  func.func @transform_11(%arg0: i32) -> (i32, i32) {
    %c0_i32 = arith.constant 0 : i32
    %c0_i32_0 = arith.constant 0 : i32
    %c0_i32_1 = arith.constant 0 : i32
    return %c0_i32, %c0_i32_0 : i32, i32
  }
  func.func @transform_12(%arg0: i32) -> (i32, i32, i32) {
    %c0_i32 = arith.constant 0 : i32
    %c0_i32_0 = arith.constant 0 : i32
    %c0_i32_1 = arith.constant 0 : i32
    %c0_i32_2 = arith.constant 0 : i32
    return %c0_i32, %c0_i32_0, %c0_i32_1 : i32, i32, i32
  }
  func.func @transform_13(%arg0: i32) -> (i32, i32) {
    %c0_i32 = arith.constant 0 : i32
    %c0_i32_0 = arith.constant 0 : i32
    return %arg0, %c0_i32 : i32, i32
  }
}

</mosaic_0001>

<llo_original>
// kernel: forward.1
$region0: #{forward.1}
  #allocation0 [shape = 'u32[]', space=smem, size = 0x4, offset = 0x4, fixed_abs, tag = 'smem constant byte address 0x4 - core index']
  #allocation1 [shape = 'u32[144,128]{1,0:T(1,128)}', space=vmem, size = 0x12000, scoped, tag = 'internal scratch']
  %s0 = inlined_call_operand.vmem [shape: f32[32,64], index: 0, kind: input, shape index: {}]
  %s1 = inlined_call_operand.vmem [shape: f32[1,64], index: 1, kind: input, shape index: {}]
  %s2 = inlined_call_operand.vmem [shape: f32[1,64], index: 2, kind: input, shape index: {}]
  %s3 = inlined_call_operand.vmem [shape: bf16[3,8,16], index: 3, kind: input, shape index: {}]
  %s4 = inlined_call_operand.vmem [shape: bf16[3,64,64], index: 4, kind: input, shape index: {}]
  %s5 = inlined_call_operand.vmem [shape: bf16[64,64], index: 5, kind: input, shape index: {}]
  %s6 = inlined_call_operand.vmem [shape: f32[1,64], index: 6, kind: input, shape index: {}]
  %s7 = inlined_call_operand.vmem [shape: bf16[3,64,64], index: 7, kind: input, shape index: {}]
  %s8 = inlined_call_operand.vmem [shape: f32[1,64], index: 8, kind: input, shape index: {}]
  %s9 = inlined_call_operand.vmem [shape: f32[1,64], index: 9, kind: input, shape index: {}]
  %s10 = inlined_call_operand.vmem [shape: bf16[3,64,64], index: 10, kind: input, shape index: {}]
  %s11 = inlined_call_operand.vmem [shape: f32[1,64], index: 11, kind: input, shape index: {}]
  %s12 = inlined_call_operand.vmem [shape: bf16[3,64,64], index: 12, kind: input, shape index: {}]
  %s13 = inlined_call_operand.vmem [shape: f32[16,64], index: 13, kind: output, shape index: {}]
  %s14 = sld [smem:[#allocation0]]
  $region85: #{forward.1} parent=0
    _
  %s16 = ssub.s32 1, %s14
  %s17 = scalar_select 0, %s16, %s14
  loop: start=0, step=1, limit=4
  $region2: #{forward.1} parent=0 // loop_pre_header
    _
  $region3: #{forward.1} parent=0 // loop_header
    %s19 = sphi 0, %s23
    %p20 = scmp.ge.s32.totalorder %s19, 4
    %s29 = sphi 0, %s31
    %s32 = sphi 0, %s29
    %s33 = sphi 0, %s32
    %s49 = sphi 0, %s33
    %s53 = sphi 0, %s53
    %s55 = sphi 0, %s53
    %s56 = sphi 0, %s55
    %s70 = sphi 0, %s56
    %s74 = sphi 0, %s74
    %s76 = sphi 0, %s74
    %s77 = sphi 0, %s76
    %s91 = sphi 0, %s77
    %s95 = sphi 0, %s95
    %s97 = sphi 0, %s95
    %s98 = sphi 0, %s97
    %s112 = sphi 0, %s98
    %s116 = sphi 0, %s116
    %s118 = sphi 0, %s116
    %s119 = sphi 0, %s118
    %s133 = sphi 0, %s119
    %s137 = sphi 0, %s137
    %s139 = sphi 0, %s137
    %s140 = sphi 0, %s139
    %s154 = sphi 0, %s140
    %s158 = sphi 0, %s158
    %s160 = sphi 0, %s158
    %s161 = sphi 0, %s160
    %s175 = sphi 0, %s161
    %s179 = sphi 0, %s179
    %s181 = sphi 0, %s179
    %s182 = sphi 0, %s181
    %s196 = sphi 0, %s182
    %s200 = sphi 0, %s200
    %s202 = sphi 0, %s200
    %s203 = sphi 0, %s202
    %s217 = sphi 0, %s203
    %s221 = sphi 0, %s221
    %s223 = sphi 0, %s221
    %s224 = sphi 0, %s223
    %s238 = sphi 0, %s224
    %s242 = sphi 0, %s242
    %s244 = sphi 0, %s242
    %s245 = sphi 0, %s244
    %s259 = sphi 0, %s245
    %s263 = sphi 0, %s263
    %s265 = sphi 0, %s263
    %s266 = sphi 0, %s265
    %s280 = sphi 0, %s266
    %s284 = sphi 0, %s284
    %s286 = sphi 0, %s284
    %s287 = sphi 0, %s286
    %s301 = sphi 0, %s287
    %s307 = sphi 0, %s309
    %s310 = sphi 0, %s307
    %s311 = sphi 0, %s310
    %s327 = sphi 0, %s311
  $region4: #{forward.1} parent=0 // loop_header_branch
    %22 = sbr.rel (%p20) target = $region8
  $region5: #{forward.1} parent=0 // loop_body
    %s24 = ssub.s32 %s19, 1
    %s25 = ssub.s32 %s19, 2
    %s26 = sadd.s32 %s19, 1
    %s27 = ssub.s32 %s19, %s26
    %p28 = scmp.eq.s32.totalorder %s27, 0
    %s30 = sadd.s32 %s29, 1
    %s31 = scalar_select %p28, %s29, %s30
    %p34 = pneg %p28
    %p35 = scmp.eq.s32.totalorder %s19, 1
    %p36 = por %p34, %p35
    %p37 = scmp.ne.s32.totalorder %s29, %s32
    %p38 = scmp.eq.s32.totalorder %s19, 0
    %p39 = por %p37, %p38
    %p40 = scmp.ne.s32.totalorder %s29, %s32
    %p41 = scmp.eq.s32.totalorder %s24, 1
    %p42 = por %p40, %p41
    %p43 = scmp.ne.s32.totalorder %s32, %s33
    %p44 = scmp.eq.s32.totalorder %s24, 0
    %p45 = por %p43, %p44
    %p46 = scmp.ne.s32.totalorder %s32, %s33
    %p47 = scmp.eq.s32.totalorder %s25, 1
    %p48 = por %p46, %p47
    %p50 = scmp.ne.s32.totalorder %s33, %s49
    %p51 = scmp.eq.s32.totalorder %s25, 0
    %p52 = por %p50, %p51
    %s54 = sadd.s32 %s53, 1
    %p57 = scmp.eq.s32.totalorder %s19, 1
    %p58 = scmp.ne.s32.totalorder %s53, %s55
    %p59 = scmp.eq.s32.totalorder %s19, 0
    %p60 = por %p58, %p59
    %p61 = scmp.ne.s32.totalorder %s53, %s55
    %p62 = scmp.eq.s32.totalorder %s24, 1
    %p63 = por %p61, %p62
    %p64 = scmp.ne.s32.totalorder %s55, %s56
    %p65 = scmp.eq.s32.totalorder %s24, 0
    %p66 = por %p64, %p65
    %p67 = scmp.ne.s32.totalorder %s55, %s56
    %p68 = scmp.eq.s32.totalorder %s25, 1
    %p69 = por %p67, %p68
    %p71 = scmp.ne.s32.totalorder %s56, %s70
    %p72 = scmp.eq.s32.totalorder %s25, 0
    %p73 = por %p71, %p72
    %s75 = sadd.s32 %s74, 1
    %p78 = scmp.eq.s32.totalorder %s19, 1
    %p79 = scmp.ne.s32.totalorder %s74, %s76
    %p80 = scmp.eq.s32.totalorder %s19, 0
    %p81 = por %p79, %p80
    %p82 = scmp.ne.s32.totalorder %s74, %s76
    %p83 = scmp.eq.s32.totalorder %s24, 1
    %p84 = por %p82, %p83
    %p85 = scmp.ne.s32.totalorder %s76, %s77
    %p86 = scmp.eq.s32.totalorder %s24, 0
    %p87 = por %p85, %p86
    %p88 = scmp.ne.s32.totalorder %s76, %s77
    %p89 = scmp.eq.s32.totalorder %s25, 1
    %p90 = por %p88, %p89
    %p92 = scmp.ne.s32.totalorder %s77, %s91
    %p93 = scmp.eq.s32.totalorder %s25, 0
    %p94 = por %p92, %p93
    %s96 = sadd.s32 %s95, 1
    %p99 = scmp.eq.s32.totalorder %s19, 1
    %p100 = scmp.ne.s32.totalorder %s95, %s97
    %p101 = scmp.eq.s32.totalorder %s19, 0
    %p102 = por %p100, %p101
    %p103 = scmp.ne.s32.totalorder %s95, %s97
    %p104 = scmp.eq.s32.totalorder %s24, 1
    %p105 = por %p103, %p104
    %p106 = scmp.ne.s32.totalorder %s97, %s98
    %p107 = scmp.eq.s32.totalorder %s24, 0
    %p108 = por %p106, %p107
    %p109 = scmp.ne.s32.totalorder %s97, %s98
    %p110 = scmp.eq.s32.totalorder %s25, 1
    %p111 = por %p109, %p110
    %p113 = scmp.ne.s32.totalorder %s98, %s112
    %p114 = scmp.eq.s32.totalorder %s25, 0
    %p115 = por %p113, %p114
    %s117 = sadd.s32 %s116, 1
    %p120 = scmp.eq.s32.totalorder %s19, 1
    %p121 = scmp.ne.s32.totalorder %s116, %s118
    %p122 = scmp.eq.s32.totalorder %s19, 0
    %p123 = por %p121, %p122
    %p124 = scmp.ne.s32.totalorder %s116, %s118
    %p125 = scmp.eq.s32.totalorder %s24, 1
    %p126 = por %p124, %p125
    %p127 = scmp.ne.s32.totalorder %s118, %s119
    %p128 = scmp.eq.s32.totalorder %s24, 0
    %p129 = por %p127, %p128
    %p130 = scmp.ne.s32.totalorder %s118, %s119
    %p131 = scmp.eq.s32.totalorder %s25, 1
    %p132 = por %p130, %p131
    %p134 = scmp.ne.s32.totalorder %s119, %s133
    %p135 = scmp.eq.s32.totalorder %s25, 0
    %p136 = por %p134, %p135
    %s138 = sadd.s32 %s137, 1
    %p141 = scmp.eq.s32.totalorder %s19, 1
    %p142 = scmp.ne.s32.totalorder %s137, %s139
    %p143 = scmp.eq.s32.totalorder %s19, 0
    %p144 = por %p142, %p143
    %p145 = scmp.ne.s32.totalorder %s137, %s139
    %p146 = scmp.eq.s32.totalorder %s24, 1
    %p147 = por %p145, %p146
    %p148 = scmp.ne.s32.totalorder %s139, %s140
    %p149 = scmp.eq.s32.totalorder %s24, 0
    %p150 = por %p148, %p149
    %p151 = scmp.ne.s32.totalorder %s139, %s140
    %p152 = scmp.eq.s32.totalorder %s25, 1
    %p153 = por %p151, %p152
    %p155 = scmp.ne.s32.totalorder %s140, %s154
    %p156 = scmp.eq.s32.totalorder %s25, 0
    %p157 = por %p155, %p156
    %s159 = sadd.s32 %s158, 1
    %p162 = scmp.eq.s32.totalorder %s19, 1
    %p163 = scmp.ne.s32.totalorder %s158, %s160
    %p164 = scmp.eq.s32.totalorder %s19, 0
    %p165 = por %p163, %p164
    %p166 = scmp.ne.s32.totalorder %s158, %s160
    %p167 = scmp.eq.s32.totalorder %s24, 1
    %p168 = por %p166, %p167
    %p169 = scmp.ne.s32.totalorder %s160, %s161
    %p170 = scmp.eq.s32.totalorder %s24, 0
    %p171 = por %p169, %p170
    %p172 = scmp.ne.s32.totalorder %s160, %s161
    %p173 = scmp.eq.s32.totalorder %s25, 1
    %p174 = por %p172, %p173
    %p176 = scmp.ne.s32.totalorder %s161, %s175
    %p177 = scmp.eq.s32.totalorder %s25, 0
    %p178 = por %p176, %p177
    %s180 = sadd.s32 %s179, 1
    %p183 = scmp.eq.s32.totalorder %s19, 1
    %p184 = scmp.ne.s32.totalorder %s179, %s181
    %p185 = scmp.eq.s32.totalorder %s19, 0
    %p186 = por %p184, %p185
    %p187 = scmp.ne.s32.totalorder %s179, %s181
    %p188 = scmp.eq.s32.totalorder %s24, 1
    %p189 = por %p187, %p188
    %p190 = scmp.ne.s32.totalorder %s181, %s182
    %p191 = scmp.eq.s32.totalorder %s24, 0
    %p192 = por %p190, %p191
    %p193 = scmp.ne.s32.totalorder %s181, %s182
    %p194 = scmp.eq.s32.totalorder %s25, 1
    %p195 = por %p193, %p194
    %p197 = scmp.ne.s32.totalorder %s182, %s196
    %p198 = scmp.eq.s32.totalorder %s25, 0
    %p199 = por %p197, %p198
    %s201 = sadd.s32 %s200, 1
    %p204 = scmp.eq.s32.totalorder %s19, 1
    %p205 = scmp.ne.s32.totalorder %s200, %s202
    %p206 = scmp.eq.s32.totalorder %s19, 0
    %p207 = por %p205, %p206
    %p208 = scmp.ne.s32.totalorder %s200, %s202
    %p209 = scmp.eq.s32.totalorder %s24, 1
    %p210 = por %p208, %p209
    %p211 = scmp.ne.s32.totalorder %s202, %s203
    %p212 = scmp.eq.s32.totalorder %s24, 0
    %p213 = por %p211, %p212
    %p214 = scmp.ne.s32.totalorder %s202, %s203
    %p215 = scmp.eq.s32.totalorder %s25, 1
    %p216 = por %p214, %p215
    %p218 = scmp.ne.s32.totalorder %s203, %s217
    %p219 = scmp.eq.s32.totalorder %s25, 0
    %p220 = por %p218, %p219
    %s222 = sadd.s32 %s221, 1
    %p225 = scmp.eq.s32.totalorder %s19, 1
    %p226 = scmp.ne.s32.totalorder %s221, %s223
    %p227 = scmp.eq.s32.totalorder %s19, 0
    %p228 = por %p226, %p227
    %p229 = scmp.ne.s32.totalorder %s221, %s223
    %p230 = scmp.eq.s32.totalorder %s24, 1
    %p231 = por %p229, %p230
    %p232 = scmp.ne.s32.totalorder %s223, %s224
    %p233 = scmp.eq.s32.totalorder %s24, 0
    %p234 = por %p232, %p233
    %p235 = scmp.ne.s32.totalorder %s223, %s224
    %p236 = scmp.eq.s32.totalorder %s25, 1
    %p237 = por %p235, %p236
    %p239 = scmp.ne.s32.totalorder %s224, %s238
    %p240 = scmp.eq.s32.totalorder %s25, 0
    %p241 = por %p239, %p240
    %s243 = sadd.s32 %s242, 1
    %p246 = scmp.eq.s32.totalorder %s19, 1
    %p247 = scmp.ne.s32.totalorder %s242, %s244
    %p248 = scmp.eq.s32.totalorder %s19, 0
    %p249 = por %p247, %p248
    %p250 = scmp.ne.s32.totalorder %s242, %s244
    %p251 = scmp.eq.s32.totalorder %s24, 1
    %p252 = por %p250, %p251
    %p253 = scmp.ne.s32.totalorder %s244, %s245
    %p254 = scmp.eq.s32.totalorder %s24, 0
    %p255 = por %p253, %p254
    %p256 = scmp.ne.s32.totalorder %s244, %s245
    %p257 = scmp.eq.s32.totalorder %s25, 1
    %p258 = por %p256, %p257
    %p260 = scmp.ne.s32.totalorder %s245, %s259
    %p261 = scmp.eq.s32.totalorder %s25, 0
    %p262 = por %p260, %p261
    %s264 = sadd.s32 %s263, 1
    %p267 = scmp.eq.s32.totalorder %s19, 1
    %p268 = scmp.ne.s32.totalorder %s263, %s265
    %p269 = scmp.eq.s32.totalorder %s19, 0
    %p270 = por %p268, %p269
    %p271 = scmp.ne.s32.totalorder %s263, %s265
    %p272 = scmp.eq.s32.totalorder %s24, 1
    %p273 = por %p271, %p272
    %p274 = scmp.ne.s32.totalorder %s265, %s266
    %p275 = scmp.eq.s32.totalorder %s24, 0
    %p276 = por %p274, %p275
    %p277 = scmp.ne.s32.totalorder %s265, %s266
    %p278 = scmp.eq.s32.totalorder %s25, 1
    %p279 = por %p277, %p278
    %p281 = scmp.ne.s32.totalorder %s266, %s280
    %p282 = scmp.eq.s32.totalorder %s25, 0
    %p283 = por %p281, %p282
    %s285 = sadd.s32 %s284, 1
    %p288 = scmp.eq.s32.totalorder %s19, 1
    %p289 = scmp.ne.s32.totalorder %s284, %s286
    %p290 = scmp.eq.s32.totalorder %s19, 0
    %p291 = por %p289, %p290
    %p292 = scmp.ne.s32.totalorder %s284, %s286
    %p293 = scmp.eq.s32.totalorder %s24, 1
    %p294 = por %p292, %p293
    %p295 = scmp.ne.s32.totalorder %s286, %s287
    %p296 = scmp.eq.s32.totalorder %s24, 0
    %p297 = por %p295, %p296
    %p298 = scmp.ne.s32.totalorder %s286, %s287
    %p299 = scmp.eq.s32.totalorder %s25, 1
    %p300 = por %p298, %p299
    %p302 = scmp.ne.s32.totalorder %s287, %s301
    %p303 = scmp.eq.s32.totalorder %s25, 0
    %p304 = por %p302, %p303
    %s305 = ssub.s32 %s19, %s26
    %p306 = scmp.eq.s32.totalorder %s305, 0
    %s308 = sadd.s32 %s307, 1
    %s309 = scalar_select %p306, %s307, %s308
    %p312 = pneg %p306
    %p313 = scmp.eq.s32.totalorder %s19, 1
    %p314 = por %p312, %p313
    %p315 = scmp.ne.s32.totalorder %s307, %s310
    %p316 = scmp.eq.s32.totalorder %s19, 0
    %p317 = por %p315, %p316
    %p318 = scmp.ne.s32.totalorder %s307, %s310
    %p319 = scmp.eq.s32.totalorder %s24, 1
    %p320 = por %p318, %p319
    %p321 = scmp.ne.s32.totalorder %s310, %s311
    %p322 = scmp.eq.s32.totalorder %s24, 0
    %p323 = por %p321, %p322
    %p324 = scmp.ne.s32.totalorder %s310, %s311
    %p325 = scmp.eq.s32.totalorder %s25, 1
    %p326 = por %p324, %p325
    %p328 = scmp.ne.s32.totalorder %s311, %s327
    %p329 = scmp.eq.s32.totalorder %s25, 0
    %p330 = por %p328, %p329
    %p331 = scmp.le.s32.totalorder 1, %s19
    %p332 = scmp.lt.s32.totalorder %s19, 3
    %p333 = pnand %p331, %p332
    %p334 = pneg %p333
    // Predicated region
    $region9: #{forward.1} parent=5 // pred_check
      _
    $region10: #{forward.1} parent=5 // pred_check_branch
      %336 = sbr.rel (%p333) target = $region12
    $region11: #{forward.1} parent=5 // pred_region
      %s337 = ssub.s32 %s19, 1
      // Predicated region
      $region13: #{forward.1} parent=11 // pred_check
        %p338 = pneg %p66
      $region14: #{forward.1} parent=11 // pred_check_branch
        %340 = sbr.rel (%p338) target = $region16
      $region15: #{forward.1} parent=11 // pred_region
        _
      $region16: #{forward.1} parent=11 // pred_fallthru
        _
      // Predicated region
      $region17: #{forward.1} parent=11 // pred_check
        %p341 = pneg %p87
      $region18: #{forward.1} parent=11 // pred_check_branch
        %343 = sbr.rel (%p341) target = $region20
      $region19: #{forward.1} parent=11 // pred_region
        _
      $region20: #{forward.1} parent=11 // pred_fallthru
        _
      // Predicated region
      $region21: #{forward.1} parent=11 // pred_check
        %p344 = pneg %p108
      $region22: #{forward.1} parent=11 // pred_check_branch
        %346 = sbr.rel (%p344) target = $region24
      $region23: #{forward.1} parent=11 // pred_region
        _
      $region24: #{forward.1} parent=11 // pred_fallthru
        _
      // Predicated region
      $region25: #{forward.1} parent=11 // pred_check
        %p347 = pneg %p129
      $region26: #{forward.1} parent=11 // pred_check_branch
        %349 = sbr.rel (%p347) target = $region28
      $region27: #{forward.1} parent=11 // pred_region
        _
      $region28: #{forward.1} parent=11 // pred_fallthru
        _
      // Predicated region
      $region29: #{forward.1} parent=11 // pred_check
        %p350 = pneg %p150
      $region30: #{forward.1} parent=11 // pred_check_branch
        %352 = sbr.rel (%p350) target = $region32
      $region31: #{forward.1} parent=11 // pred_region
        _
      $region32: #{forward.1} parent=11 // pred_fallthru
        _
      // Predicated region
      $region33: #{forward.1} parent=11 // pred_check
        %p353 = pneg %p171
      $region34: #{forward.1} parent=11 // pred_check_branch
        %355 = sbr.rel (%p353) target = $region36
      $region35: #{forward.1} parent=11 // pred_region
        _
      $region36: #{forward.1} parent=11 // pred_fallthru
        _
      // Predicated region
      $region37: #{forward.1} parent=11 // pred_check
        %p356 = pneg %p192
      $region38: #{forward.1} parent=11 // pred_check_branch
        %358 = sbr.rel (%p356) target = $region40
      $region39: #{forward.1} parent=11 // pred_region
        _
      $region40: #{forward.1} parent=11 // pred_fallthru
        _
      // Predicated region
      $region41: #{forward.1} parent=11 // pred_check
        %p359 = pneg %p213
      $region42: #{forward.1} parent=11 // pred_check_branch
        %361 = sbr.rel (%p359) target = $region44
      $region43: #{forward.1} parent=11 // pred_region
        _
      $region44: #{forward.1} parent=11 // pred_fallthru
        _
      // Predicated region
      $region45: #{forward.1} parent=11 // pred_check
        %p362 = pneg %p234
      $region46: #{forward.1} parent=11 // pred_check_branch
        %364 = sbr.rel (%p362) target = $region48
      $region47: #{forward.1} parent=11 // pred_region
        _
      $region48: #{forward.1} parent=11 // pred_fallthru
        _
      // Predicated region
      $region49: #{forward.1} parent=11 // pred_check
        %p365 = pneg %p255
      $region50: #{forward.1} parent=11 // pred_check_branch
        %367 = sbr.rel (%p365) target = $region52
      $region51: #{forward.1} parent=11 // pred_region
        _
      $region52: #{forward.1} parent=11 // pred_fallthru
        _
      // Predicated region
      $region53: #{forward.1} parent=11 // pred_check
        %p368 = pneg %p276
      $region54: #{forward.1} parent=11 // pred_check_branch
        %370 = sbr.rel (%p368) target = $region56
      $region55: #{forward.1} parent=11 // pred_region
        _
      $region56: #{forward.1} parent=11 // pred_fallthru
        _
      // Predicated region
      $region57: #{forward.1} parent=11 // pred_check
        %p371 = pneg %p297
      $region58: #{forward.1} parent=11 // pred_check_branch
        %373 = sbr.rel (%p371) target = $region60
      $region59: #{forward.1} parent=11 // pred_region
        _
      $region60: #{forward.1} parent=11 // pred_fallthru
        _
    $region12: #{forward.1} parent=5 // pred_fallthru
      _
    %p374 = scmp.lt.s32.totalorder %s19, 2
    // Predicated region
    $region61: #{forward.1} parent=5 // pred_check
      %p375 = pneg %p374
    $region62: #{forward.1} parent=5 // pred_check_branch
      %377 = sbr.rel (%p375) target = $region64
    $region63: #{forward.1} parent=5 // pred_region
      // Predicated region
      $region65: #{forward.1} parent=63 // pred_check
        %p378 = pneg %p39
      $region66: #{forward.1} parent=63 // pred_check_branch
        %380 = sbr.rel (%p378) target = $region68
      $region67: #{forward.1} parent=63 // pred_region
        %s381 = smul.u32 2, %s19
        %p382 = scmp.lt.s32.totalorder %s381, 3
        %s383 = scalar_select %p382, %s381, 3
        %s384 = smul.addr %s383, 8
        %s385 = scalar_lea.vmem %s0, %s384
        %s386 = smul.u32 2, %s19
      $region68: #{forward.1} parent=63 // pred_fallthru
        _
    $region64: #{forward.1} parent=5 // pred_fallthru
      _
    %p387 = scmp.le.s32.totalorder 1, %s19
    %p388 = scmp.lt.s32.totalorder %s19, 3
    %p389 = pnand %p387, %p388
    %p390 = pneg %p389
    // Predicated region
    $region69: #{forward.1} parent=5 // pred_check
      _
    $region70: #{forward.1} parent=5 // pred_check_branch
      %392 = sbr.rel (%p389) target = $region72
    $region71: #{forward.1} parent=5 // pred_region
      %s393 = ssub.s32 %s19, 1
      %s394 = smul.u32 2, %s24
      %p395 = scmp.lt.s32.totalorder %s394, 3
      %s396 = scalar_select %p395, %s394, 3
      %s397 = smul.addr %s396, 8
      %s398 = scalar_lea.vmem %s0, %s397
      %p399 = pneg %p45
      %p400 = pneg %p42
      %p401 = pneg %p66
      %p402 = pneg %p63
      %p403 = pneg %p87
      %p404 = pneg %p84
      %p405 = pneg %p108
      %p406 = pneg %p105
      %p407 = pneg %p129
      %p408 = pneg %p126
      %p409 = pneg %p150
      %p410 = pneg %p147
      %p411 = pneg %p171
      %p412 = pneg %p168
      %p413 = pneg %p192
      %p414 = pneg %p189
      %p415 = pneg %p213
      %p416 = pneg %p210
      %p417 = pneg %p234
      %p418 = pneg %p231
      %p419 = pneg %p255
      %p420 = pneg %p252
      %p421 = pneg %p276
      %p422 = pneg %p273
      %p423 = pneg %p297
      %p424 = pneg %p294
      %p425 = pneg %p323
      %p426 = pneg %p320
      %p427 = scmp.lt.s32.totalorder %s24, 1
      %s428 = scalar_select %p427, %s24, 1
      %s429 = smul.addr %s428, 8
      %s430 = scalar_lea.vmem %s13, %s429
      %s431 = smul.u32 2, %s24
      %p432 = scmp.lt.s32.totalorder %s431, 3
      %s433 = scalar_select %p432, %s431, 3
      %s434 = smul.addr %s433, 8
      %s435 = scalar_lea.vmem %s0, %s434
      %s436 = smul.u32 2, %s24
      %p437 = scmp.lt.s32.totalorder %s24, 1
      %s438 = scalar_select %p437, %s24, 1
      %s439 = smul.addr %s438, 8
      %s440 = scalar_lea.vmem %s13, %s439
      %v442 = vld [vmem:[%s435] sm:$0xff]
      %v443 = vld [vmem:[%s435 + $0x8] sm:$0xff]
      %v444 = vld [vmem:[%s1] sm:$0x1]
      %v446 = vlaneseq
      %v447 = vshrl.u32 %v446, 7
      %v448 = vsub.s32 0, %v447
      %v449 = vrot.slane %v444, %v448
      %v451 = vmul.f32 %v442, %v449
      %v452 = vmul.f32 %v443, %v449
      %v453 = vld [vmem:[%s2] sm:$0x1]
      %v455 = vlaneseq
      %v456 = vshrl.u32 %v455, 7
      %v457 = vsub.s32 0, %v456
      %v458 = vrot.slane %v453, %v457
      %v460 = vadd.f32 %v451, %v458
      %v461 = vadd.f32 %v452, %v458
      %v462 = vmax.f32 %v460, 0.0
      %v463 = vmax.f32 %v461, 0.0
      %v464 = vpack.c.bf16 %v463, %v462
      %v465 = vld [vmem:[%s3] sm:$0xf]
      %vm466 = vcmask 130048
      %v468 = vsel %vm466, %v465, 0
      %470 = vmatprep.subr.bf16.mxu0 0
      %471 = vmatpush1.bf16.msra.mxu0 0
      %472 = vmatprep.subr.bf16.mxu0 0
      %473 = vmatpush1.bf16.msra.mxu0 0
      %474 = vmatprep.subr.bf16.mxu0 0
      %475 = vmatpush1.bf16.msra.mxu0 0
      %476 = vmatprep.subr.bf16.mxu0 0
      %477 = vmatpush1.bf16.msra.mxu0 0
      %478 = vmatprep.subr.bf16.mxu0 0
      %479 = vmatpush1.bf16.msra.mxu0 0
      %480 = vmatprep.subr.bf16.mxu0 0
      %481 = vmatpush1.bf16.msra.mxu0 0
      %482 = vmatprep.subr.bf16.mxu0 0
      %483 = vmatpush1.bf16.msra.mxu0 0
      %484 = vmatprep.subr.bf16.mxu0 0
      %485 = vmatpush1.bf16.msra.mxu0 %v464
      %486 = vmatprep.subr.bf16.mxu0 0
      %487 = vmatpush2.bf16.msra.mxu0 0
      %488 = vmatprep.subr.bf16.mxu0 0
      %489 = vmatpush2.bf16.msra.mxu0 0
      %490 = vmatprep.subr.bf16.mxu0 0
      %491 = vmatpush2.bf16.msra.mxu0 0
      %492 = vmatprep.subr.bf16.mxu0 0
      %493 = vmatpush2.bf16.msra.mxu0 0
      %494 = vmatprep.subr.bf16.mxu0 0
      %495 = vmatpush2.bf16.msra.mxu0 0
      %496 = vmatprep.subr.bf16.mxu0 0
      %497 = vmatpush2.bf16.msra.mxu0 0
      %498 = vmatprep.subr.bf16.mxu0 0
      %499 = vmatpush2.bf16.msra.mxu0 0
      %500 = vmatprep.subr.bf16.mxu0 0
      %501 = vmatpush2.bf16.msra.mxu0 0
      %502 = vmatprep.mubr.bf16.mxu0 0
      %503 = vmatmul.mubr.bf16.gmra.mxu0 %v468
      %v504 = vpop.f32.mrf.mxu0
      %v505 = vadd.f32 0.0, %v504
      %v506 = vpop.f32.mrf.mxu0
      %v507 = vpop.f32.mrf.mxu0
      %v508 = vpop.f32.mrf.mxu0
      %509 = vdwg.mxu0
      %v510 = vpack.c.bf16 %v505, %v505
      %v511 = vld [vmem:[%s4] sm:$0xf]
      %v512 = vld [vmem:[%s4 + $0x4] sm:$0xf]
      %v513 = vld [vmem:[%s4 + $0x8] sm:$0xf]
      %v514 = vld [vmem:[%s4 + $0xc] sm:$0xf]
      %v515 = vld [vmem:[%s4 + $0x10] sm:$0xf]
      %v516 = vld [vmem:[%s4 + $0x14] sm:$0xf]
      %v517 = vld [vmem:[%s4 + $0x18] sm:$0xf]
      %v518 = vld [vmem:[%s4 + $0x1c] sm:$0xf]
      %s519 = scalar_lea.vmem %s3, 4
      %v520 = vld [vmem:[%s519] sm:$0xf]
      %v522 = vsel %vm466, %v520, 0
      %524 = vmatprep.subr.bf16.mxu0 0
      %525 = vmatpush1.bf16.msra.mxu0 0
      %526 = vmatprep.subr.bf16.mxu0 0
      %527 = vmatpush1.bf16.msra.mxu0 0
      %528 = vmatprep.subr.bf16.mxu0 0
      %529 = vmatpush1.bf16.msra.mxu0 0
      %530 = vmatprep.subr.bf16.mxu0 0
      %531 = vmatpush1.bf16.msra.mxu0 0
      %532 = vmatprep.subr.bf16.mxu0 0
      %533 = vmatpush1.bf16.msra.mxu0 0
      %534 = vmatprep.subr.bf16.mxu0 0
      %535 = vmatpush1.bf16.msra.mxu0 0
      %536 = vmatprep.subr.bf16.mxu0 0
      %537 = vmatpush1.bf16.msra.mxu0 0
      %538 = vmatprep.subr.bf16.mxu0 0
      %539 = vmatpush1.bf16.msra.mxu0 %v464
      %540 = vmatprep.subr.bf16.mxu0 0
      %541 = vmatpush2.bf16.msra.mxu0 0
      %542 = vmatprep.subr.bf16.mxu0 0
      %543 = vmatpush2.bf16.msra.mxu0 0
      %544 = vmatprep.subr.bf16.mxu0 0
      %545 = vmatpush2.bf16.msra.mxu0 0
      %546 = vmatprep.subr.bf16.mxu0 0
      %547 = vmatpush2.bf16.msra.mxu0 0
      %548 = vmatprep.subr.bf16.mxu0 0
      %549 = vmatpush2.bf16.msra.mxu0 0
      %550 = vmatprep.subr.bf16.mxu0 0
      %551 = vmatpush2.bf16.msra.mxu0 0
      %552 = vmatprep.subr.bf16.mxu0 0
      %553 = vmatpush2.bf16.msra.mxu0 0
      %554 = vmatprep.subr.bf16.mxu0 0
      %555 = vmatpush2.bf16.msra.mxu0 0
      %556 = vmatprep.mubr.bf16.mxu0 0
      %557 = vmatmul.mubr.bf16.gmra.mxu0 %v522
      %v558 = vpop.f32.mrf.mxu0
      %v559 = vadd.f32 0.0, %v558
      %v560 = vpop.f32.mrf.mxu0
      %v561 = vpop.f32.mrf.mxu0
      %v562 = vpop.f32.mrf.mxu0
      %563 = vdwg.mxu0
      %v564 = vpack.c.bf16 %v559, %v559
      %s565 = scalar_lea.vmem %s4, 32
      %v566 = vld [vmem:[%s565] sm:$0xf]
      %v567 = vld [vmem:[%s565 + $0x4] sm:$0xf]
      %v568 = vld [vmem:[%s565 + $0x8] sm:$0xf]
      %v569 = vld [vmem:[%s565 + $0xc] sm:$0xf]
      %v570 = vld [vmem:[%s565 + $0x10] sm:$0xf]
      %v571 = vld [vmem:[%s565 + $0x14] sm:$0xf]
      %v572 = vld [vmem:[%s565 + $0x18] sm:$0xf]
      %v573 = vld [vmem:[%s565 + $0x1c] sm:$0xf]
      %v582 = vunpack.c.l.b16 %v566
      %v583 = vunpack.c.l.b16 %v567
      %v584 = vunpack.c.l.b16 %v568
      %v585 = vunpack.c.l.b16 %v569
      %v586 = vunpack.c.l.b16 %v570
      %v587 = vunpack.c.l.b16 %v571
      %v588 = vunpack.c.l.b16 %v572
      %v589 = vunpack.c.l.b16 %v573
      %v590 = vpack.c.b16 %v583, %v582
      %v591 = vpack.c.b16 %v585, %v584
      %v592 = vpack.c.b16 %v587, %v586
      %v593 = vpack.c.b16 %v589, %v588
      %vm598 = vcmask 523264
      %v600 = vsel %vm598, %v564, 0
      %602 = vmatprep.subr.bf16.mxu0 0
      %603 = vmatpush1.bf16.msra.mxu0 0
      %604 = vmatprep.subr.bf16.mxu0 0
      %605 = vmatpush1.bf16.msra.mxu0 0
      %606 = vmatprep.subr.bf16.mxu0 0
      %607 = vmatpush1.bf16.msra.mxu0 0
      %608 = vmatprep.subr.bf16.mxu0 0
      %609 = vmatpush1.bf16.msra.mxu0 0
      %610 = vmatprep.subr.bf16.mxu0 0
      %611 = vmatpush1.bf16.msra.mxu0 %v593
      %612 = vmatprep.subr.bf16.mxu0 0
      %613 = vmatpush1.bf16.msra.mxu0 %v592
      %614 = vmatprep.subr.bf16.mxu0 0
      %615 = vmatpush1.bf16.msra.mxu0 %v591
      %616 = vmatprep.subr.bf16.mxu0 0
      %617 = vmatpush1.bf16.msra.mxu0 %v590
      %618 = vmatprep.subr.bf16.mxu0 0
      %619 = vmatpush2.bf16.msra.mxu0 0
      %620 = vmatprep.subr.bf16.mxu0 0
      %621 = vmatpush2.bf16.msra.mxu0 0
      %622 = vmatprep.subr.bf16.mxu0 0
      %623 = vmatpush2.bf16.msra.mxu0 0
      %624 = vmatprep.subr.bf16.mxu0 0
      %625 = vmatpush2.bf16.msra.mxu0 0
      %626 = vmatprep.subr.bf16.mxu0 0
      %627 = vmatpush2.bf16.msra.mxu0 0
      %628 = vmatprep.subr.bf16.mxu0 0
      %629 = vmatpush2.bf16.msra.mxu0 0
      %630 = vmatprep.subr.bf16.mxu0 0
      %631 = vmatpush2.bf16.msra.mxu0 0
      %632 = vmatprep.subr.bf16.mxu0 0
      %633 = vmatpush2.bf16.msra.mxu0 0
      %634 = vmatprep.mubr.bf16.mxu0 0
      %635 = vmatmul.mubr.bf16.gmra.mxu0 %v600
      %v636 = vpop.f32.mrf.mxu0
      %v637 = vadd.f32 0.0, %v636
      %v638 = vpop.f32.mrf.mxu0
      %v639 = vpop.f32.mrf.mxu0
      %v640 = vpop.f32.mrf.mxu0
      %641 = vdwg.mxu0
      %v650 = vunpack.c.l.b16 %v511
      %v651 = vunpack.c.l.b16 %v512
      %v652 = vunpack.c.l.b16 %v513
      %v653 = vunpack.c.l.b16 %v514
      %v654 = vunpack.c.l.b16 %v515
      %v655 = vunpack.c.l.b16 %v516
      %v656 = vunpack.c.l.b16 %v517
      %v657 = vunpack.c.l.b16 %v518
      %v658 = vpack.c.b16 %v651, %v650
      %v659 = vpack.c.b16 %v653, %v652
      %v660 = vpack.c.b16 %v655, %v654
      %v661 = vpack.c.b16 %v657, %v656
      %v667 = vsel %vm598, %v510, 0
      %669 = vmatprep.subr.bf16.mxu0 0
      %670 = vmatpush1.bf16.msra.mxu0 0
      %671 = vmatprep.subr.bf16.mxu0 0
      %672 = vmatpush1.bf16.msra.mxu0 0
      %673 = vmatprep.subr.bf16.mxu0 0
      %674 = vmatpush1.bf16.msra.mxu0 0
      %675 = vmatprep.subr.bf16.mxu0 0
      %676 = vmatpush1.bf16.msra.mxu0 0
      %677 = vmatprep.subr.bf16.mxu0 0
      %678 = vmatpush1.bf16.msra.mxu0 %v661
      %679 = vmatprep.subr.bf16.mxu0 0
      %680 = vmatpush1.bf16.msra.mxu0 %v660
      %681 = vmatprep.subr.bf16.mxu0 0
      %682 = vmatpush1.bf16.msra.mxu0 %v659
      %683 = vmatprep.subr.bf16.mxu0 0
      %684 = vmatpush1.bf16.msra.mxu0 %v658
      %685 = vmatprep.subr.bf16.mxu0 0
      %686 = vmatpush2.bf16.msra.mxu0 0
      %687 = vmatprep.subr.bf16.mxu0 0
      %688 = vmatpush2.bf16.msra.mxu0 0
      %689 = vmatprep.subr.bf16.mxu0 0
      %690 = vmatpush2.bf16.msra.mxu0 0
      %691 = vmatprep.subr.bf16.mxu0 0
      %692 = vmatpush2.bf16.msra.mxu0 0
      %693 = vmatprep.subr.bf16.mxu0 0
      %694 = vmatpush2.bf16.msra.mxu0 0
      %695 = vmatprep.subr.bf16.mxu0 0
      %696 = vmatpush2.bf16.msra.mxu0 0
      %697 = vmatprep.subr.bf16.mxu0 0
      %698 = vmatpush2.bf16.msra.mxu0 0
      %699 = vmatprep.subr.bf16.mxu0 0
      %700 = vmatpush2.bf16.msra.mxu0 0
      %701 = vmatprep.mubr.bf16.mxu0 0
      %702 = vmatmul.mubr.bf16.gmra.mxu0 %v667
      %v703 = vpop.f32.mrf.mxu0
      %v704 = vadd.f32 %v637, %v703
      %v705 = vpop.f32.mrf.mxu0
      %v706 = vpop.f32.mrf.mxu0
      %v707 = vpop.f32.mrf.mxu0
      %708 = vdwg.mxu0
      %s709 = scalar_lea.vmem %s3, 8
      %v710 = vld [vmem:[%s709] sm:$0xf]
      %v712 = vsel %vm466, %v710, 0
      %714 = vmatprep.subr.bf16.mxu0 0
      %715 = vmatpush1.bf16.msra.mxu0 0
      %716 = vmatprep.subr.bf16.mxu0 0
      %717 = vmatpush1.bf16.msra.mxu0 0
      %718 = vmatprep.subr.bf16.mxu0 0
      %719 = vmatpush1.bf16.msra.mxu0 0
      %720 = vmatprep.subr.bf16.mxu0 0
      %721 = vmatpush1.bf16.msra.mxu0 0
      %722 = vmatprep.subr.bf16.mxu0 0
      %723 = vmatpush1.bf16.msra.mxu0 0
      %724 = vmatprep.subr.bf16.mxu0 0
      %725 = vmatpush1.bf16.msra.mxu0 0
      %726 = vmatprep.subr.bf16.mxu0 0
      %727 = vmatpush1.bf16.msra.mxu0 0
      %728 = vmatprep.subr.bf16.mxu0 0
      %729 = vmatpush1.bf16.msra.mxu0 %v464
      %730 = vmatprep.subr.bf16.mxu0 0
      %731 = vmatpush2.bf16.msra.mxu0 0
      %732 = vmatprep.subr.bf16.mxu0 0
      %733 = vmatpush2.bf16.msra.mxu0 0
      %734 = vmatprep.subr.bf16.mxu0 0
      %735 = vmatpush2.bf16.msra.mxu0 0
      %736 = vmatprep.subr.bf16.mxu0 0
      %737 = vmatpush2.bf16.msra.mxu0 0
      %738 = vmatprep.subr.bf16.mxu0 0
      %739 = vmatpush2.bf16.msra.mxu0 0
      %740 = vmatprep.subr.bf16.mxu0 0
      %741 = vmatpush2.bf16.msra.mxu0 0
      %742 = vmatprep.subr.bf16.mxu0 0
      %743 = vmatpush2.bf16.msra.mxu0 0
      %744 = vmatprep.subr.bf16.mxu0 0
      %745 = vmatpush2.bf16.msra.mxu0 0
      %746 = vmatprep.mubr.bf16.mxu0 0
      %747 = vmatmul.mubr.bf16.gmra.mxu0 %v712
      %v748 = vpop.f32.mrf.mxu0
      %v749 = vadd.f32 0.0, %v748
      %v750 = vpop.f32.mrf.mxu0
      %v751 = vpop.f32.mrf.mxu0
      %v752 = vpop.f32.mrf.mxu0
      %753 = vdwg.mxu0
      %v754 = vpack.c.bf16 %v749, %v749
      %s755 = scalar_lea.vmem %s4, 64
      %v756 = vld [vmem:[%s755] sm:$0xf]
      %v757 = vld [vmem:[%s755 + $0x4] sm:$0xf]
      %v758 = vld [vmem:[%s755 + $0x8] sm:$0xf]
      %v759 = vld [vmem:[%s755 + $0xc] sm:$0xf]
      %v760 = vld [vmem:[%s755 + $0x10] sm:$0xf]
      %v761 = vld [vmem:[%s755 + $0x14] sm:$0xf]
      %v762 = vld [vmem:[%s755 + $0x18] sm:$0xf]
      %v763 = vld [vmem:[%s755 + $0x1c] sm:$0xf]
      %v772 = vunpack.c.l.b16 %v756
      %v773 = vunpack.c.l.b16 %v757
      %v774 = vunpack.c.l.b16 %v758
      %v775 = vunpack.c.l.b16 %v759
      %v776 = vunpack.c.l.b16 %v760
      %v777 = vunpack.c.l.b16 %v761
      %v778 = vunpack.c.l.b16 %v762
      %v779 = vunpack.c.l.b16 %v763
      %v780 = vpack.c.b16 %v773, %v772
      %v781 = vpack.c.b16 %v775, %v774
      %v782 = vpack.c.b16 %v777, %v776
      %v783 = vpack.c.b16 %v779, %v778
      %v789 = vsel %vm598, %v754, 0
      %791 = vmatprep.subr.bf16.mxu0 0
      %792 = vmatpush1.bf16.msra.mxu0 0
      %793 = vmatprep.subr.bf16.mxu0 0
      %794 = vmatpush1.bf16.msra.mxu0 0
      %795 = vmatprep.subr.bf16.mxu0 0
      %796 = vmatpush1.bf16.msra.mxu0 0
      %797 = vmatprep.subr.bf16.mxu0 0
      %798 = vmatpush1.bf16.msra.mxu0 0
      %799 = vmatprep.subr.bf16.mxu0 0
      %800 = vmatpush1.bf16.msra.mxu0 %v783
      %801 = vmatprep.subr.bf16.mxu0 0
      %802 = vmatpush1.bf16.msra.mxu0 %v782
      %803 = vmatprep.subr.bf16.mxu0 0
      %804 = vmatpush1.bf16.msra.mxu0 %v781
      %805 = vmatprep.subr.bf16.mxu0 0
      %806 = vmatpush1.bf16.msra.mxu0 %v780
      %807 = vmatprep.subr.bf16.mxu0 0
      %808 = vmatpush2.bf16.msra.mxu0 0
      %809 = vmatprep.subr.bf16.mxu0 0
      %810 = vmatpush2.bf16.msra.mxu0 0
      %811 = vmatprep.subr.bf16.mxu0 0
      %812 = vmatpush2.bf16.msra.mxu0 0
      %813 = vmatprep.subr.bf16.mxu0 0
      %814 = vmatpush2.bf16.msra.mxu0 0
      %815 = vmatprep.subr.bf16.mxu0 0
      %816 = vmatpush2.bf16.msra.mxu0 0
      %817 = vmatprep.subr.bf16.mxu0 0
      %818 = vmatpush2.bf16.msra.mxu0 0
      %819 = vmatprep.subr.bf16.mxu0 0
      %820 = vmatpush2.bf16.msra.mxu0 0
      %821 = vmatprep.subr.bf16.mxu0 0
      %822 = vmatpush2.bf16.msra.mxu0 0
      %823 = vmatprep.mubr.bf16.mxu0 0
      %824 = vmatmul.mubr.bf16.gmra.mxu0 %v789
      %v825 = vpop.f32.mrf.mxu0
      %v826 = vadd.f32 0.0, %v825
      %v827 = vpop.f32.mrf.mxu0
      %v828 = vpop.f32.mrf.mxu0
      %v829 = vpop.f32.mrf.mxu0
      %830 = vdwg.mxu0
      %v831 = vadd.f32 %v704, %v826
      %v832 = vld [vmem:[%s5] sm:$0xf]
      %v833 = vld [vmem:[%s5 + $0x4] sm:$0xf]
      %v834 = vld [vmem:[%s5 + $0x8] sm:$0xf]
      %v835 = vld [vmem:[%s5 + $0xc] sm:$0xf]
      %v836 = vld [vmem:[%s5 + $0x10] sm:$0xf]
      %v837 = vld [vmem:[%s5 + $0x14] sm:$0xf]
      %v838 = vld [vmem:[%s5 + $0x18] sm:$0xf]
      %v839 = vld [vmem:[%s5 + $0x1c] sm:$0xf]
      %v848 = vunpack.c.l.b16 %v832
      %v849 = vunpack.c.l.b16 %v833
      %v850 = vunpack.c.l.b16 %v834
      %v851 = vunpack.c.l.b16 %v835
      %v852 = vunpack.c.l.b16 %v836
      %v853 = vunpack.c.l.b16 %v837
      %v854 = vunpack.c.l.b16 %v838
      %v855 = vunpack.c.l.b16 %v839
      %v856 = vpack.c.b16 %v849, %v848
      %v857 = vpack.c.b16 %v851, %v850
      %v858 = vpack.c.b16 %v853, %v852
      %v859 = vpack.c.b16 %v855, %v854
      %864 = vmatprep.subr.bf16.mxu0 0
      %865 = vmatpush1.bf16.msra.mxu0 0
      %866 = vmatprep.subr.bf16.mxu0 0
      %867 = vmatpush1.bf16.msra.mxu0 0
      %868 = vmatprep.subr.bf16.mxu0 0
      %869 = vmatpush1.bf16.msra.mxu0 0
      %870 = vmatprep.subr.bf16.mxu0 0
      %871 = vmatpush1.bf16.msra.mxu0 0
      %872 = vmatprep.subr.bf16.mxu0 0
      %873 = vmatpush1.bf16.msra.mxu0 %v859
      %874 = vmatprep.subr.bf16.mxu0 0
      %875 = vmatpush1.bf16.msra.mxu0 %v858
      %876 = vmatprep.subr.bf16.mxu0 0
      %877 = vmatpush1.bf16.msra.mxu0 %v857
      %878 = vmatprep.subr.bf16.mxu0 0
      %879 = vmatpush1.bf16.msra.mxu0 %v856
      %880 = vmatprep.subr.bf16.mxu0 0
      %881 = vmatpush2.bf16.msra.mxu0 0
      %882 = vmatprep.subr.bf16.mxu0 0
      %883 = vmatpush2.bf16.msra.mxu0 0
      %884 = vmatprep.subr.bf16.mxu0 0
      %885 = vmatpush2.bf16.msra.mxu0 0
      %886 = vmatprep.subr.bf16.mxu0 0
      %887 = vmatpush2.bf16.msra.mxu0 0
      %888 = vmatprep.subr.bf16.mxu0 0
      %889 = vmatpush2.bf16.msra.mxu0 0
      %890 = vmatprep.subr.bf16.mxu0 0
      %891 = vmatpush2.bf16.msra.mxu0 0
      %892 = vmatprep.subr.bf16.mxu0 0
      %893 = vmatpush2.bf16.msra.mxu0 0
      %894 = vmatprep.subr.bf16.mxu0 0
      %895 = vmatpush2.bf16.msra.mxu0 0
      %896 = vmatprep.mubr.bf16.mxu0 0
      %897 = vmatmul.mubr.bf16.gmra.mxu0 %v600
      %v898 = vpop.f32.mrf.mxu0
      %v899 = vadd.f32 0.0, %v898
      %v900 = vpop.f32.mrf.mxu0
      %v901 = vpop.f32.mrf.mxu0
      %v902 = vpop.f32.mrf.mxu0
      %903 = vdwg.mxu0
      %v904 = vld [vmem:[%s6] sm:$0x1]
      %v906 = vlaneseq
      %v907 = vshrl.u32 %v906, 7
      %v908 = vsub.s32 0, %v907
      %v909 = vrot.slane %v904, %v908
      %v911 = vadd.f32 %v831, %v909
      %v912 = vmax.f32 %v911, 0.0
      %v913 = vpack.c.bf16 %v912, %v912
      %v914 = vlaneseq
      %v915 = vshrl.u32 %v914, 7
      %vm916 = vcmp.lt.s32.totalorder %v915, 0
      %v917 = vsub.s32 0, %v915
      %v918 = vsel %vm916, %v917, %v915
      %v919 = vshrl.u32 %v918, 3
      %v920 = vand.u32 %v918, 7
      %v921 = vsub.s32 0, %v920
      %v922 = vsel %vm916, %v921, %v920
      %vm923 = vcmp.ne.s32.totalorder %v922, 0
      %vm924 = vcmp.lt.s32.totalorder %v922, 0
      %vm925 = vmand %vm924, %vm923
      %v926 = vadd.s32 %v922, 8
      %v927 = vsel %vm925, %v926, %v922
      %s928 = scalar_lea.vmem %s7, 32
      %v929 = vld [vmem:[%s928] sm:$0xf]
      %v930 = vld [vmem:[%s928 + $0x4] sm:$0xf]
      %v931 = vld [vmem:[%s928 + $0x8] sm:$0xf]
      %v932 = vld [vmem:[%s928 + $0xc] sm:$0xf]
      %v933 = vld [vmem:[%s928 + $0x10] sm:$0xf]
      %v934 = vld [vmem:[%s928 + $0x14] sm:$0xf]
      %v935 = vld [vmem:[%s928 + $0x18] sm:$0xf]
      %v936 = vld [vmem:[%s928 + $0x1c] sm:$0xf]
      %v937 = vld [vmem:[%s7] sm:$0xf]
      %v938 = vld [vmem:[%s7 + $0x4] sm:$0xf]
      %v939 = vld [vmem:[%s7 + $0x8] sm:$0xf]
      %v940 = vld [vmem:[%s7 + $0xc] sm:$0xf]
      %v941 = vld [vmem:[%s7 + $0x10] sm:$0xf]
      %v942 = vld [vmem:[%s7 + $0x14] sm:$0xf]
      %v943 = vld [vmem:[%s7 + $0x18] sm:$0xf]
      %v944 = vld [vmem:[%s7 + $0x1c] sm:$0xf]
      %v953 = vunpack.c.l.b16 %v937
      %v954 = vunpack.c.l.b16 %v938
      %v955 = vunpack.c.l.b16 %v939
      %v956 = vunpack.c.l.b16 %v940
      %v957 = vunpack.c.l.b16 %v941
      %v958 = vunpack.c.l.b16 %v942
      %v959 = vunpack.c.l.b16 %v943
      %v960 = vunpack.c.l.b16 %v944
      %v961 = vpack.c.b16 %v954, %v953
      %v962 = vpack.c.b16 %v956, %v955
      %v963 = vpack.c.b16 %v958, %v957
      %v964 = vpack.c.b16 %v960, %v959
      %v970 = vsel %vm598, %v913, 0
      %972 = vmatprep.subr.bf16.mxu0 0
      %973 = vmatpush1.bf16.msra.mxu0 0
      %974 = vmatprep.subr.bf16.mxu0 0
      %975 = vmatpush1.bf16.msra.mxu0 0
      %976 = vmatprep.subr.bf16.mxu0 0
      %977 = vmatpush1.bf16.msra.mxu0 0
      %978 = vmatprep.subr.bf16.mxu0 0
      %979 = vmatpush1.bf16.msra.mxu0 0
      %980 = vmatprep.subr.bf16.mxu0 0
      %981 = vmatpush1.bf16.msra.mxu0 %v964
      %982 = vmatprep.subr.bf16.mxu0 0
      %983 = vmatpush1.bf16.msra.mxu0 %v963
      %984 = vmatprep.subr.bf16.mxu0 0
      %985 = vmatpush1.bf16.msra.mxu0 %v962
      %986 = vmatprep.subr.bf16.mxu0 0
      %987 = vmatpush1.bf16.msra.mxu0 %v961
      %988 = vmatprep.subr.bf16.mxu0 0
      %989 = vmatpush2.bf16.msra.mxu0 0
      %990 = vmatprep.subr.bf16.mxu0 0
      %991 = vmatpush2.bf16.msra.mxu0 0
      %992 = vmatprep.subr.bf16.mxu0 0
      %993 = vmatpush2.bf16.msra.mxu0 0
      %994 = vmatprep.subr.bf16.mxu0 0
      %995 = vmatpush2.bf16.msra.mxu0 0
      %996 = vmatprep.subr.bf16.mxu0 0
      %997 = vmatpush2.bf16.msra.mxu0 0
      %998 = vmatprep.subr.bf16.mxu0 0
      %999 = vmatpush2.bf16.msra.mxu0 0
      %1000 = vmatprep.subr.bf16.mxu0 0
      %1001 = vmatpush2.bf16.msra.mxu0 0
      %1002 = vmatprep.subr.bf16.mxu0 0
      %1003 = vmatpush2.bf16.msra.mxu0 0
      %1004 = vmatprep.mubr.bf16.mxu0 0
      %1005 = vmatmul.mubr.bf16.gmra.mxu0 %v970
      %v1006 = vpop.f32.mrf.mxu0
      %v1007 = vadd.f32 0.0, %v1006
      %v1008 = vpop.f32.mrf.mxu0
      %v1009 = vpop.f32.mrf.mxu0
      %v1010 = vpop.f32.mrf.mxu0
      %1011 = vdwg.mxu0
      %v1012 = vrot.slane %v1007, 7
      %vm1013 = vcmp.ge.s32.totalorder %v927, 1
      %v1014 = vsel %vm1013, 1, 0
      %vm1015 = vcmp.eq.s32.totalorder %v1014, 1
      %v1016 = vsel %vm1015, %v1012, 0.0
      %v1025 = vunpack.c.l.b16 %v929
      %v1026 = vunpack.c.l.b16 %v930
      %v1027 = vunpack.c.l.b16 %v931
      %v1028 = vunpack.c.l.b16 %v932
      %v1029 = vunpack.c.l.b16 %v933
      %v1030 = vunpack.c.l.b16 %v934
      %v1031 = vunpack.c.l.b16 %v935
      %v1032 = vunpack.c.l.b16 %v936
      %v1033 = vpack.c.b16 %v1026, %v1025
      %v1034 = vpack.c.b16 %v1028, %v1027
      %v1035 = vpack.c.b16 %v1030, %v1029
      %v1036 = vpack.c.b16 %v1032, %v1031
      %1041 = vmatprep.subr.bf16.mxu0 0
      %1042 = vmatpush1.bf16.msra.mxu0 0
      %1043 = vmatprep.subr.bf16.mxu0 0
      %1044 = vmatpush1.bf16.msra.mxu0 0
      %1045 = vmatprep.subr.bf16.mxu0 0
      %1046 = vmatpush1.bf16.msra.mxu0 0
      %1047 = vmatprep.subr.bf16.mxu0 0
      %1048 = vmatpush1.bf16.msra.mxu0 0
      %1049 = vmatprep.subr.bf16.mxu0 0
      %1050 = vmatpush1.bf16.msra.mxu0 %v1036
      %1051 = vmatprep.subr.bf16.mxu0 0
      %1052 = vmatpush1.bf16.msra.mxu0 %v1035
      %1053 = vmatprep.subr.bf16.mxu0 0
      %1054 = vmatpush1.bf16.msra.mxu0 %v1034
      %1055 = vmatprep.subr.bf16.mxu0 0
      %1056 = vmatpush1.bf16.msra.mxu0 %v1033
      %1057 = vmatprep.subr.bf16.mxu0 0
      %1058 = vmatpush2.bf16.msra.mxu0 0
      %1059 = vmatprep.subr.bf16.mxu0 0
      %1060 = vmatpush2.bf16.msra.mxu0 0
      %1061 = vmatprep.subr.bf16.mxu0 0
      %1062 = vmatpush2.bf16.msra.mxu0 0
      %1063 = vmatprep.subr.bf16.mxu0 0
      %1064 = vmatpush2.bf16.msra.mxu0 0
      %1065 = vmatprep.subr.bf16.mxu0 0
      %1066 = vmatpush2.bf16.msra.mxu0 0
      %1067 = vmatprep.subr.bf16.mxu0 0
      %1068 = vmatpush2.bf16.msra.mxu0 0
      %1069 = vmatprep.subr.bf16.mxu0 0
      %1070 = vmatpush2.bf16.msra.mxu0 0
      %1071 = vmatprep.subr.bf16.mxu0 0
      %1072 = vmatpush2.bf16.msra.mxu0 0
      %1073 = vmatprep.mubr.bf16.mxu0 0
      %1074 = vmatmul.mubr.bf16.gmra.mxu0 %v970
      %v1075 = vpop.f32.mrf.mxu0
      %v1076 = vadd.f32 %v1016, %v1075
      %v1077 = vpop.f32.mrf.mxu0
      %v1078 = vpop.f32.mrf.mxu0
      %v1079 = vpop.f32.mrf.mxu0
      %1080 = vdwg.mxu0
      %s1081 = scalar_lea.vmem %s7, 64
      %v1082 = vld [vmem:[%s1081] sm:$0xf]
      %v1083 = vld [vmem:[%s1081 + $0x4] sm:$0xf]
      %v1084 = vld [vmem:[%s1081 + $0x8] sm:$0xf]
      %v1085 = vld [vmem:[%s1081 + $0xc] sm:$0xf]
      %v1086 = vld [vmem:[%s1081 + $0x10] sm:$0xf]
      %v1087 = vld [vmem:[%s1081 + $0x14] sm:$0xf]
      %v1088 = vld [vmem:[%s1081 + $0x18] sm:$0xf]
      %v1089 = vld [vmem:[%s1081 + $0x1c] sm:$0xf]
      %v1098 = vunpack.c.l.b16 %v1082
      %v1099 = vunpack.c.l.b16 %v1083
      %v1100 = vunpack.c.l.b16 %v1084
      %v1101 = vunpack.c.l.b16 %v1085
      %v1102 = vunpack.c.l.b16 %v1086
      %v1103 = vunpack.c.l.b16 %v1087
      %v1104 = vunpack.c.l.b16 %v1088
      %v1105 = vunpack.c.l.b16 %v1089
      %v1106 = vpack.c.b16 %v1099, %v1098
      %v1107 = vpack.c.b16 %v1101, %v1100
      %v1108 = vpack.c.b16 %v1103, %v1102
      %v1109 = vpack.c.b16 %v1105, %v1104
      %1114 = vmatprep.subr.bf16.mxu0 0
      %1115 = vmatpush1.bf16.msra.mxu0 0
      %1116 = vmatprep.subr.bf16.mxu0 0
      %1117 = vmatpush1.bf16.msra.mxu0 0
      %1118 = vmatprep.subr.bf16.mxu0 0
      %1119 = vmatpush1.bf16.msra.mxu0 0
      %1120 = vmatprep.subr.bf16.mxu0 0
      %1121 = vmatpush1.bf16.msra.mxu0 0
      %1122 = vmatprep.subr.bf16.mxu0 0
      %1123 = vmatpush1.bf16.msra.mxu0 %v1109
      %1124 = vmatprep.subr.bf16.mxu0 0
      %1125 = vmatpush1.bf16.msra.mxu0 %v1108
      %1126 = vmatprep.subr.bf16.mxu0 0
      %1127 = vmatpush1.bf16.msra.mxu0 %v1107
      %1128 = vmatprep.subr.bf16.mxu0 0
      %1129 = vmatpush1.bf16.msra.mxu0 %v1106
      %1130 = vmatprep.subr.bf16.mxu0 0
      %1131 = vmatpush2.bf16.msra.mxu0 0
      %1132 = vmatprep.subr.bf16.mxu0 0
      %1133 = vmatpush2.bf16.msra.mxu0 0
      %1134 = vmatprep.subr.bf16.mxu0 0
      %1135 = vmatpush2.bf16.msra.mxu0 0
      %1136 = vmatprep.subr.bf16.mxu0 0
      %1137 = vmatpush2.bf16.msra.mxu0 0
      %1138 = vmatprep.subr.bf16.mxu0 0
      %1139 = vmatpush2.bf16.msra.mxu0 0
      %1140 = vmatprep.subr.bf16.mxu0 0
      %1141 = vmatpush2.bf16.msra.mxu0 0
      %1142 = vmatprep.subr.bf16.mxu0 0
      %1143 = vmatpush2.bf16.msra.mxu0 0
      %1144 = vmatprep.subr.bf16.mxu0 0
      %1145 = vmatpush2.bf16.msra.mxu0 0
      %1146 = vmatprep.mubr.bf16.mxu0 0
      %1147 = vmatmul.mubr.bf16.gmra.mxu0 %v970
      %v1148 = vpop.f32.mrf.mxu0
      %v1149 = vadd.f32 0.0, %v1148
      %v1150 = vpop.f32.mrf.mxu0
      %v1151 = vpop.f32.mrf.mxu0
      %v1152 = vpop.f32.mrf.mxu0
      %1153 = vdwg.mxu0
      %v1154 = vrot.slane %v1149, 1
      %vm1155 = vcmp.lt.s32.totalorder %v927, 7
      %v1156 = vsel %vm1155, 1, 0
      %vm1157 = vcmp.eq.s32.totalorder %v1156, 1
      %v1158 = vsel %vm1157, %v1154, 0.0
      %v1159 = vadd.f32 %v1076, %v1158
      %v1160 = vadd.f32 %v1159, %v899
      %v1161 = vld [vmem:[%s8] sm:$0x1]
      %v1163 = vlaneseq
      %v1164 = vshrl.u32 %v1163, 7
      %v1165 = vsub.s32 0, %v1164
      %v1166 = vrot.slane %v1161, %v1165
      %v1168 = vmul.f32 %v1160, %v1166
      %v1169 = vld [vmem:[%s9] sm:$0x1]
      %v1171 = vlaneseq
      %v1172 = vshrl.u32 %v1171, 7
      %v1173 = vsub.s32 0, %v1172
      %v1174 = vrot.slane %v1169, %v1173
      %v1176 = vadd.f32 %v1168, %v1174
      %v1177 = vmax.f32 %v1176, 0.0
      %v1178 = vpack.c.bf16 %v1177, %v1177
      %s1179 = scalar_lea.vmem %s10, 32
      %v1180 = vld [vmem:[%s1179] sm:$0xf]
      %v1181 = vld [vmem:[%s1179 + $0x4] sm:$0xf]
      %v1182 = vld [vmem:[%s1179 + $0x8] sm:$0xf]
      %v1183 = vld [vmem:[%s1179 + $0xc] sm:$0xf]
      %v1184 = vld [vmem:[%s1179 + $0x10] sm:$0xf]
      %v1185 = vld [vmem:[%s1179 + $0x14] sm:$0xf]
      %v1186 = vld [vmem:[%s1179 + $0x18] sm:$0xf]
      %v1187 = vld [vmem:[%s1179 + $0x1c] sm:$0xf]
      %v1188 = vld [vmem:[%s10] sm:$0xf]
      %v1189 = vld [vmem:[%s10 + $0x4] sm:$0xf]
      %v1190 = vld [vmem:[%s10 + $0x8] sm:$0xf]
      %v1191 = vld [vmem:[%s10 + $0xc] sm:$0xf]
      %v1192 = vld [vmem:[%s10 + $0x10] sm:$0xf]
      %v1193 = vld [vmem:[%s10 + $0x14] sm:$0xf]
      %v1194 = vld [vmem:[%s10 + $0x18] sm:$0xf]
      %v1195 = vld [vmem:[%s10 + $0x1c] sm:$0xf]
      %v1204 = vunpack.c.l.b16 %v1188
      %v1205 = vunpack.c.l.b16 %v1189
      %v1206 = vunpack.c.l.b16 %v1190
      %v1207 = vunpack.c.l.b16 %v1191
      %v1208 = vunpack.c.l.b16 %v1192
      %v1209 = vunpack.c.l.b16 %v1193
      %v1210 = vunpack.c.l.b16 %v1194
      %v1211 = vunpack.c.l.b16 %v1195
      %v1212 = vpack.c.b16 %v1205, %v1204
      %v1213 = vpack.c.b16 %v1207, %v1206
      %v1214 = vpack.c.b16 %v1209, %v1208
      %v1215 = vpack.c.b16 %v1211, %v1210
      %v1221 = vsel %vm598, %v1178, 0
      %1223 = vmatprep.subr.bf16.mxu0 0
      %1224 = vmatpush1.bf16.msra.mxu0 0
      %1225 = vmatprep.subr.bf16.mxu0 0
      %1226 = vmatpush1.bf16.msra.mxu0 0
      %1227 = vmatprep.subr.bf16.mxu0 0
      %1228 = vmatpush1.bf16.msra.mxu0 0
      %1229 = vmatprep.subr.bf16.mxu0 0
      %1230 = vmatpush1.bf16.msra.mxu0 0
      %1231 = vmatprep.subr.bf16.mxu0 0
      %1232 = vmatpush1.bf16.msra.mxu0 %v1215
      %1233 = vmatprep.subr.bf16.mxu0 0
      %1234 = vmatpush1.bf16.msra.mxu0 %v1214
      %1235 = vmatprep.subr.bf16.mxu0 0
      %1236 = vmatpush1.bf16.msra.mxu0 %v1213
      %1237 = vmatprep.subr.bf16.mxu0 0
      %1238 = vmatpush1.bf16.msra.mxu0 %v1212
      %1239 = vmatprep.subr.bf16.mxu0 0
      %1240 = vmatpush2.bf16.msra.mxu0 0
      %1241 = vmatprep.subr.bf16.mxu0 0
      %1242 = vmatpush2.bf16.msra.mxu0 0
      %1243 = vmatprep.subr.bf16.mxu0 0
      %1244 = vmatpush2.bf16.msra.mxu0 0
      %1245 = vmatprep.subr.bf16.mxu0 0
      %1246 = vmatpush2.bf16.msra.mxu0 0
      %1247 = vmatprep.subr.bf16.mxu0 0
      %1248 = vmatpush2.bf16.msra.mxu0 0
      %1249 = vmatprep.subr.bf16.mxu0 0
      %1250 = vmatpush2.bf16.msra.mxu0 0
      %1251 = vmatprep.subr.bf16.mxu0 0
      %1252 = vmatpush2.bf16.msra.mxu0 0
      %1253 = vmatprep.subr.bf16.mxu0 0
      %1254 = vmatpush2.bf16.msra.mxu0 0
      %1255 = vmatprep.mubr.bf16.mxu0 0
      %1256 = vmatmul.mubr.bf16.gmra.mxu0 %v1221
      %v1257 = vpop.f32.mrf.mxu0
      %v1258 = vadd.f32 0.0, %v1257
      %v1259 = vpop.f32.mrf.mxu0
      %v1260 = vpop.f32.mrf.mxu0
      %v1261 = vpop.f32.mrf.mxu0
      %1262 = vdwg.mxu0
      %v1263 = vrot.slane %v1258, 7
      %v1264 = vsel %vm1015, %v1263, 0.0
      %v1273 = vunpack.c.l.b16 %v1180
      %v1274 = vunpack.c.l.b16 %v1181
      %v1275 = vunpack.c.l.b16 %v1182
      %v1276 = vunpack.c.l.b16 %v1183
      %v1277 = vunpack.c.l.b16 %v1184
      %v1278 = vunpack.c.l.b16 %v1185
      %v1279 = vunpack.c.l.b16 %v1186
      %v1280 = vunpack.c.l.b16 %v1187
      %v1281 = vpack.c.b16 %v1274, %v1273
      %v1282 = vpack.c.b16 %v1276, %v1275
      %v1283 = vpack.c.b16 %v1278, %v1277
      %v1284 = vpack.c.b16 %v1280, %v1279
      %1289 = vmatprep.subr.bf16.mxu0 0
      %1290 = vmatpush1.bf16.msra.mxu0 0
      %1291 = vmatprep.subr.bf16.mxu0 0
      %1292 = vmatpush1.bf16.msra.mxu0 0
      %1293 = vmatprep.subr.bf16.mxu0 0
      %1294 = vmatpush1.bf16.msra.mxu0 0
      %1295 = vmatprep.subr.bf16.mxu0 0
      %1296 = vmatpush1.bf16.msra.mxu0 0
      %1297 = vmatprep.subr.bf16.mxu0 0
      %1298 = vmatpush1.bf16.msra.mxu0 %v1284
      %1299 = vmatprep.subr.bf16.mxu0 0
      %1300 = vmatpush1.bf16.msra.mxu0 %v1283
      %1301 = vmatprep.subr.bf16.mxu0 0
      %1302 = vmatpush1.bf16.msra.mxu0 %v1282
      %1303 = vmatprep.subr.bf16.mxu0 0
      %1304 = vmatpush1.bf16.msra.mxu0 %v1281
      %1305 = vmatprep.subr.bf16.mxu0 0
      %1306 = vmatpush2.bf16.msra.mxu0 0
      %1307 = vmatprep.subr.bf16.mxu0 0
      %1308 = vmatpush2.bf16.msra.mxu0 0
      %1309 = vmatprep.subr.bf16.mxu0 0
      %1310 = vmatpush2.bf16.msra.mxu0 0
      %1311 = vmatprep.subr.bf16.mxu0 0
      %1312 = vmatpush2.bf16.msra.mxu0 0
      %1313 = vmatprep.subr.bf16.mxu0 0
      %1314 = vmatpush2.bf16.msra.mxu0 0
      %1315 = vmatprep.subr.bf16.mxu0 0
      %1316 = vmatpush2.bf16.msra.mxu0 0
      %1317 = vmatprep.subr.bf16.mxu0 0
      %1318 = vmatpush2.bf16.msra.mxu0 0
      %1319 = vmatprep.subr.bf16.mxu0 0
      %1320 = vmatpush2.bf16.msra.mxu0 0
      %1321 = vmatprep.mubr.bf16.mxu0 0
      %1322 = vmatmul.mubr.bf16.gmra.mxu0 %v1221
      %v1323 = vpop.f32.mrf.mxu0
      %v1324 = vadd.f32 %v1264, %v1323
      %v1325 = vpop.f32.mrf.mxu0
      %v1326 = vpop.f32.mrf.mxu0
      %v1327 = vpop.f32.mrf.mxu0
      %1328 = vdwg.mxu0
      %s1329 = scalar_lea.vmem %s10, 64
      %v1330 = vld [vmem:[%s1329] sm:$0xf]
      %v1331 = vld [vmem:[%s1329 + $0x4] sm:$0xf]
      %v1332 = vld [vmem:[%s1329 + $0x8] sm:$0xf]
      %v1333 = vld [vmem:[%s1329 + $0xc] sm:$0xf]
      %v1334 = vld [vmem:[%s1329 + $0x10] sm:$0xf]
      %v1335 = vld [vmem:[%s1329 + $0x14] sm:$0xf]
      %v1336 = vld [vmem:[%s1329 + $0x18] sm:$0xf]
      %v1337 = vld [vmem:[%s1329 + $0x1c] sm:$0xf]
      %v1346 = vunpack.c.l.b16 %v1330
      %v1347 = vunpack.c.l.b16 %v1331
      %v1348 = vunpack.c.l.b16 %v1332
      %v1349 = vunpack.c.l.b16 %v1333
      %v1350 = vunpack.c.l.b16 %v1334
      %v1351 = vunpack.c.l.b16 %v1335
      %v1352 = vunpack.c.l.b16 %v1336
      %v1353 = vunpack.c.l.b16 %v1337
      %v1354 = vpack.c.b16 %v1347, %v1346
      %v1355 = vpack.c.b16 %v1349, %v1348
      %v1356 = vpack.c.b16 %v1351, %v1350
      %v1357 = vpack.c.b16 %v1353, %v1352
      %1362 = vmatprep.subr.bf16.mxu0 0
      %1363 = vmatpush1.bf16.msra.mxu0 0
      %1364 = vmatprep.subr.bf16.mxu0 0
      %1365 = vmatpush1.bf16.msra.mxu0 0
      %1366 = vmatprep.subr.bf16.mxu0 0
      %1367 = vmatpush1.bf16.msra.mxu0 0
      %1368 = vmatprep.subr.bf16.mxu0 0
      %1369 = vmatpush1.bf16.msra.mxu0 0
      %1370 = vmatprep.subr.bf16.mxu0 0
      %1371 = vmatpush1.bf16.msra.mxu0 %v1357
      %1372 = vmatprep.subr.bf16.mxu0 0
      %1373 = vmatpush1.bf16.msra.mxu0 %v1356
      %1374 = vmatprep.subr.bf16.mxu0 0
      %1375 = vmatpush1.bf16.msra.mxu0 %v1355
      %1376 = vmatprep.subr.bf16.mxu0 0
      %1377 = vmatpush1.bf16.msra.mxu0 %v1354
      %1378 = vmatprep.subr.bf16.mxu0 0
      %1379 = vmatpush2.bf16.msra.mxu0 0
      %1380 = vmatprep.subr.bf16.mxu0 0
      %1381 = vmatpush2.bf16.msra.mxu0 0
      %1382 = vmatprep.subr.bf16.mxu0 0
      %1383 = vmatpush2.bf16.msra.mxu0 0
      %1384 = vmatprep.subr.bf16.mxu0 0
      %1385 = vmatpush2.bf16.msra.mxu0 0
      %1386 = vmatprep.subr.bf16.mxu0 0
      %1387 = vmatpush2.bf16.msra.mxu0 0
      %1388 = vmatprep.subr.bf16.mxu0 0
      %1389 = vmatpush2.bf16.msra.mxu0 0
      %1390 = vmatprep.subr.bf16.mxu0 0
      %1391 = vmatpush2.bf16.msra.mxu0 0
      %1392 = vmatprep.subr.bf16.mxu0 0
      %1393 = vmatpush2.bf16.msra.mxu0 0
      %1394 = vmatprep.mubr.bf16.mxu0 0
      %1395 = vmatmul.mubr.bf16.gmra.mxu0 %v1221
      %v1396 = vpop.f32.mrf.mxu0
      %v1397 = vadd.f32 0.0, %v1396
      %v1398 = vpop.f32.mrf.mxu0
      %v1399 = vpop.f32.mrf.mxu0
      %v1400 = vpop.f32.mrf.mxu0
      %1401 = vdwg.mxu0
      %v1402 = vrot.slane %v1397, 1
      %v1403 = vsel %vm1157, %v1402, 0.0
      %v1404 = vadd.f32 %v1324, %v1403
      %v1405 = vld [vmem:[%s11] sm:$0x1]
      %v1407 = vlaneseq
      %v1408 = vshrl.u32 %v1407, 7
      %v1409 = vsub.s32 0, %v1408
      %v1410 = vrot.slane %v1405, %v1409
      %v1412 = vadd.f32 %v1404, %v1410
      %v1413 = vmax.f32 %v1412, 0.0
      %v1414 = vpack.c.bf16 %v1413, %v1413
      %s1415 = scalar_lea.vmem %s12, 32
      %v1416 = vld [vmem:[%s1415] sm:$0xf]
      %v1417 = vld [vmem:[%s1415 + $0x4] sm:$0xf]
      %v1418 = vld [vmem:[%s1415 + $0x8] sm:$0xf]
      %v1419 = vld [vmem:[%s1415 + $0xc] sm:$0xf]
      %v1420 = vld [vmem:[%s1415 + $0x10] sm:$0xf]
      %v1421 = vld [vmem:[%s1415 + $0x14] sm:$0xf]
      %v1422 = vld [vmem:[%s1415 + $0x18] sm:$0xf]
      %v1423 = vld [vmem:[%s1415 + $0x1c] sm:$0xf]
      %v1424 = vld [vmem:[%s12] sm:$0xf]
      %v1425 = vld [vmem:[%s12 + $0x4] sm:$0xf]
      %v1426 = vld [vmem:[%s12 + $0x8] sm:$0xf]
      %v1427 = vld [vmem:[%s12 + $0xc] sm:$0xf]
      %v1428 = vld [vmem:[%s12 + $0x10] sm:$0xf]
      %v1429 = vld [vmem:[%s12 + $0x14] sm:$0xf]
      %v1430 = vld [vmem:[%s12 + $0x18] sm:$0xf]
      %v1431 = vld [vmem:[%s12 + $0x1c] sm:$0xf]
      %v1440 = vunpack.c.l.b16 %v1424
      %v1441 = vunpack.c.l.b16 %v1425
      %v1442 = vunpack.c.l.b16 %v1426
      %v1443 = vunpack.c.l.b16 %v1427
      %v1444 = vunpack.c.l.b16 %v1428
      %v1445 = vunpack.c.l.b16 %v1429
      %v1446 = vunpack.c.l.b16 %v1430
      %v1447 = vunpack.c.l.b16 %v1431
      %v1448 = vpack.c.b16 %v1441, %v1440
      %v1449 = vpack.c.b16 %v1443, %v1442
      %v1450 = vpack.c.b16 %v1445, %v1444
      %v1451 = vpack.c.b16 %v1447, %v1446
      %v1457 = vsel %vm598, %v1414, 0
      %1459 = vmatprep.subr.bf16.mxu0 0
      %1460 = vmatpush1.bf16.msra.mxu0 0
      %1461 = vmatprep.subr.bf16.mxu0 0
      %1462 = vmatpush1.bf16.msra.mxu0 0
      %1463 = vmatprep.subr.bf16.mxu0 0
      %1464 = vmatpush1.bf16.msra.mxu0 0
      %1465 = vmatprep.subr.bf16.mxu0 0
      %1466 = vmatpush1.bf16.msra.mxu0 0
      %1467 = vmatprep.subr.bf16.mxu0 0
      %1468 = vmatpush1.bf16.msra.mxu0 %v1451
      %1469 = vmatprep.subr.bf16.mxu0 0
      %1470 = vmatpush1.bf16.msra.mxu0 %v1450
      %1471 = vmatprep.subr.bf16.mxu0 0
      %1472 = vmatpush1.bf16.msra.mxu0 %v1449
      %1473 = vmatprep.subr.bf16.mxu0 0
      %1474 = vmatpush1.bf16.msra.mxu0 %v1448
      %1475 = vmatprep.subr.bf16.mxu0 0
      %1476 = vmatpush2.bf16.msra.mxu0 0
      %1477 = vmatprep.subr.bf16.mxu0 0
      %1478 = vmatpush2.bf16.msra.mxu0 0
      %1479 = vmatprep.subr.bf16.mxu0 0
      %1480 = vmatpush2.bf16.msra.mxu0 0
      %1481 = vmatprep.subr.bf16.mxu0 0
      %1482 = vmatpush2.bf16.msra.mxu0 0
      %1483 = vmatprep.subr.bf16.mxu0 0
      %1484 = vmatpush2.bf16.msra.mxu0 0
      %1485 = vmatprep.subr.bf16.mxu0 0
      %1486 = vmatpush2.bf16.msra.mxu0 0
      %1487 = vmatprep.subr.bf16.mxu0 0
      %1488 = vmatpush2.bf16.msra.mxu0 0
      %1489 = vmatprep.subr.bf16.mxu0 0
      %1490 = vmatpush2.bf16.msra.mxu0 0
      %1491 = vmatprep.mubr.bf16.mxu0 0
      %1492 = vmatmul.mubr.bf16.gmra.mxu0 %v1457
      %v1493 = vpop.f32.mrf.mxu0
      %v1494 = vadd.f32 0.0, %v1493
      %v1495 = vpop.f32.mrf.mxu0
      %v1496 = vpop.f32.mrf.mxu0
      %v1497 = vpop.f32.mrf.mxu0
      %1498 = vdwg.mxu0
      %v1499 = vrot.slane %v1494, 7
      %v1500 = vsel %vm1015, %v1499, 0.0
      %v1509 = vunpack.c.l.b16 %v1416
      %v1510 = vunpack.c.l.b16 %v1417
      %v1511 = vunpack.c.l.b16 %v1418
      %v1512 = vunpack.c.l.b16 %v1419
      %v1513 = vunpack.c.l.b16 %v1420
      %v1514 = vunpack.c.l.b16 %v1421
      %v1515 = vunpack.c.l.b16 %v1422
      %v1516 = vunpack.c.l.b16 %v1423
      %v1517 = vpack.c.b16 %v1510, %v1509
      %v1518 = vpack.c.b16 %v1512, %v1511
      %v1519 = vpack.c.b16 %v1514, %v1513
      %v1520 = vpack.c.b16 %v1516, %v1515
      %1525 = vmatprep.subr.bf16.mxu0 0
      %1526 = vmatpush1.bf16.msra.mxu0 0
      %1527 = vmatprep.subr.bf16.mxu0 0
      %1528 = vmatpush1.bf16.msra.mxu0 0
      %1529 = vmatprep.subr.bf16.mxu0 0
      %1530 = vmatpush1.bf16.msra.mxu0 0
      %1531 = vmatprep.subr.bf16.mxu0 0
      %1532 = vmatpush1.bf16.msra.mxu0 0
      %1533 = vmatprep.subr.bf16.mxu0 0
      %1534 = vmatpush1.bf16.msra.mxu0 %v1520
      %1535 = vmatprep.subr.bf16.mxu0 0
      %1536 = vmatpush1.bf16.msra.mxu0 %v1519
      %1537 = vmatprep.subr.bf16.mxu0 0
      %1538 = vmatpush1.bf16.msra.mxu0 %v1518
      %1539 = vmatprep.subr.bf16.mxu0 0
      %1540 = vmatpush1.bf16.msra.mxu0 %v1517
      %1541 = vmatprep.subr.bf16.mxu0 0
      %1542 = vmatpush2.bf16.msra.mxu0 0
      %1543 = vmatprep.subr.bf16.mxu0 0
      %1544 = vmatpush2.bf16.msra.mxu0 0
      %1545 = vmatprep.subr.bf16.mxu0 0
      %1546 = vmatpush2.bf16.msra.mxu0 0
      %1547 = vmatprep.subr.bf16.mxu0 0
      %1548 = vmatpush2.bf16.msra.mxu0 0
      %1549 = vmatprep.subr.bf16.mxu0 0
      %1550 = vmatpush2.bf16.msra.mxu0 0
      %1551 = vmatprep.subr.bf16.mxu0 0
      %1552 = vmatpush2.bf16.msra.mxu0 0
      %1553 = vmatprep.subr.bf16.mxu0 0
      %1554 = vmatpush2.bf16.msra.mxu0 0
      %1555 = vmatprep.subr.bf16.mxu0 0
      %1556 = vmatpush2.bf16.msra.mxu0 0
      %1557 = vmatprep.mubr.bf16.mxu0 0
      %1558 = vmatmul.mubr.bf16.gmra.mxu0 %v1457
      %v1559 = vpop.f32.mrf.mxu0
      %v1560 = vadd.f32 %v1500, %v1559
      %v1561 = vpop.f32.mrf.mxu0
      %v1562 = vpop.f32.mrf.mxu0
      %v1563 = vpop.f32.mrf.mxu0
      %1564 = vdwg.mxu0
      %s1565 = scalar_lea.vmem %s12, 64
      %v1566 = vld [vmem:[%s1565] sm:$0xf]
      %v1567 = vld [vmem:[%s1565 + $0x4] sm:$0xf]
      %v1568 = vld [vmem:[%s1565 + $0x8] sm:$0xf]
      %v1569 = vld [vmem:[%s1565 + $0xc] sm:$0xf]
      %v1570 = vld [vmem:[%s1565 + $0x10] sm:$0xf]
      %v1571 = vld [vmem:[%s1565 + $0x14] sm:$0xf]
      %v1572 = vld [vmem:[%s1565 + $0x18] sm:$0xf]
      %v1573 = vld [vmem:[%s1565 + $0x1c] sm:$0xf]
      %v1582 = vunpack.c.l.b16 %v1566
      %v1583 = vunpack.c.l.b16 %v1567
      %v1584 = vunpack.c.l.b16 %v1568
      %v1585 = vunpack.c.l.b16 %v1569
      %v1586 = vunpack.c.l.b16 %v1570
      %v1587 = vunpack.c.l.b16 %v1571
      %v1588 = vunpack.c.l.b16 %v1572
      %v1589 = vunpack.c.l.b16 %v1573
      %v1590 = vpack.c.b16 %v1583, %v1582
      %v1591 = vpack.c.b16 %v1585, %v1584
      %v1592 = vpack.c.b16 %v1587, %v1586
      %v1593 = vpack.c.b16 %v1589, %v1588
      %1598 = vmatprep.subr.bf16.mxu0 0
      %1599 = vmatpush1.bf16.msra.mxu0 0
      %1600 = vmatprep.subr.bf16.mxu0 0
      %1601 = vmatpush1.bf16.msra.mxu0 0
      %1602 = vmatprep.subr.bf16.mxu0 0
      %1603 = vmatpush1.bf16.msra.mxu0 0
      %1604 = vmatprep.subr.bf16.mxu0 0
      %1605 = vmatpush1.bf16.msra.mxu0 0
      %1606 = vmatprep.subr.bf16.mxu0 0
      %1607 = vmatpush1.bf16.msra.mxu0 %v1593
      %1608 = vmatprep.subr.bf16.mxu0 0
      %1609 = vmatpush1.bf16.msra.mxu0 %v1592
      %1610 = vmatprep.subr.bf16.mxu0 0
      %1611 = vmatpush1.bf16.msra.mxu0 %v1591
      %1612 = vmatprep.subr.bf16.mxu0 0
      %1613 = vmatpush1.bf16.msra.mxu0 %v1590
      %1614 = vmatprep.subr.bf16.mxu0 0
      %1615 = vmatpush2.bf16.msra.mxu0 0
      %1616 = vmatprep.subr.bf16.mxu0 0
      %1617 = vmatpush2.bf16.msra.mxu0 0
      %1618 = vmatprep.subr.bf16.mxu0 0
      %1619 = vmatpush2.bf16.msra.mxu0 0
      %1620 = vmatprep.subr.bf16.mxu0 0
      %1621 = vmatpush2.bf16.msra.mxu0 0
      %1622 = vmatprep.subr.bf16.mxu0 0
      %1623 = vmatpush2.bf16.msra.mxu0 0
      %1624 = vmatprep.subr.bf16.mxu0 0
      %1625 = vmatpush2.bf16.msra.mxu0 0
      %1626 = vmatprep.subr.bf16.mxu0 0
      %1627 = vmatpush2.bf16.msra.mxu0 0
      %1628 = vmatprep.subr.bf16.mxu0 0
      %1629 = vmatpush2.bf16.msra.mxu0 0
      %1630 = vmatprep.mubr.bf16.mxu0 0
      %1631 = vmatmul.mubr.bf16.gmra.mxu0 %v1457
      %v1632 = vpop.f32.mrf.mxu0
      %v1633 = vadd.f32 0.0, %v1632
      %v1634 = vpop.f32.mrf.mxu0
      %v1635 = vpop.f32.mrf.mxu0
      %v1636 = vpop.f32.mrf.mxu0
      %1637 = vdwg.mxu0
      %v1638 = vrot.slane %v1633, 1
      %v1639 = vsel %vm1157, %v1638, 0.0
      %v1640 = vadd.f32 %v1560, %v1639
      %v1641 = vadd.f32 %v1640, %v1160
      %1642 = vst.msk [vmem:[%s440] sm:$0xff] %vm598, %v1641
      %p1643 = scmp.lt.s32.totalorder %s24, 1
      %s1644 = scalar_select %p1643, %s24, 1
      %s1645 = smul.addr %s1644, 8
      %s1646 = scalar_lea.vmem %s13, %s1645
      // Predicated region
      $region73: #{forward.1} parent=71 // pred_check
        %p1647 = pneg %p320
      $region74: #{forward.1} parent=71 // pred_check_branch
        %1649 = sbr.rel (%p1647) target = $region76
      $region75: #{forward.1} parent=71 // pred_region
        _
      $region76: #{forward.1} parent=71 // pred_fallthru
        _
    $region72: #{forward.1} parent=5 // pred_fallthru
      _
    %p1650 = scmp.le.s32.totalorder 2, %s19
    // Predicated region
    $region77: #{forward.1} parent=5 // pred_check
      %p1651 = pneg %p1650
    $region78: #{forward.1} parent=5 // pred_check_branch
      %1653 = sbr.rel (%p1651) target = $region80
    $region79: #{forward.1} parent=5 // pred_region
      %s1654 = ssub.s32 %s19, 2
      // Predicated region
      $region81: #{forward.1} parent=79 // pred_check
        %p1655 = pneg %p326
      $region82: #{forward.1} parent=79 // pred_check_branch
        %1657 = sbr.rel (%p1655) target = $region84
      $region83: #{forward.1} parent=79 // pred_region
        %p1658 = scmp.lt.s32.totalorder %s25, 1
        %s1659 = scalar_select %p1658, %s25, 1
        %s1660 = smul.addr %s1659, 8
        %s1661 = scalar_lea.vmem %s13, %s1660
      $region84: #{forward.1} parent=79 // pred_fallthru
        _
    $region80: #{forward.1} parent=5 // pred_fallthru
      _
  $region6: #{forward.1} parent=0 // loop_footer
    %s23 = sadd.s32 1, %s19
  $region7: #{forward.1} parent=0 // loop_footer_branch
    %18 = sbr.rel target = $region3
  $region8: #{forward.1} parent=0 // loop_exit
    _

</llo_original>
